<compile_context>
chip_gen: v5e
topology: v5e:2x2
jax: 0.10.0
libtpu: 0.0.40
codegen_flags: <defaults>
</compile_context>

<pallas_src>
import functools

import jax
import jax.numpy as jnp
from jax import lax
from jax.experimental import pallas as pl
from jax.experimental.pallas import tpu as pltpu


# ----------------------------------------------------------------------------
# Fused kernel: spectral-norm power iteration + sigma + 3x3 "same" conv.
#   w2d_ref : (OC, C*KH*KW)   w_bar flattened in PyTorch order (cols = (c,ky,kx))
#   wm_ref  : (OC, KH*KW*C)   w_bar flattened in patch order   (cols = (ky,kx,c))
#   u_ref   : (OC, 1), v_ref: (1, C*KH*KW), b_ref: (OC, 1)
#   x_ref   : (1, H+2, W+2, C)  zero-padded NHWC tile (one batch elem per step)
#   o_ref   : (1, OC, H*W)      NCHW-orientation, lane-dense output tile
#   u_out_ref: (OC, 1), v_out_ref: (1, C*KH*KW)   updated power-iteration vecs
# ----------------------------------------------------------------------------
def _sn_conv_kernel(w2d_ref, wm_ref, u_ref, v_ref, b_ref, x_ref,
                    o_ref, u_out_ref, v_out_ref,
                    *, H, W, KH, KW, power_iterations, eps, activation):
    # ---- spectral normalization on the tiny (OC, C*KH*KW) matrix.
    # Recomputed every grid step (a few hundred flops) so the batch axis can
    # stay "parallel" across TensorCores without any shared scratch state.
    # Exact f32 VPU math (for much larger C/OC this would move to MXU matvecs).
    w2d = w2d_ref[...].astype(jnp.float32)          # (OC, Wd)
    u = u_ref[...].astype(jnp.float32)              # (OC, 1)
    v = v_ref[...].astype(jnp.float32)              # (1, Wd)
    for _ in range(power_iterations):
        wtu = jnp.sum(w2d * u, axis=0, keepdims=True)           # (1, Wd) = W^T u
        v = wtu / (jnp.sqrt(jnp.sum(wtu * wtu)) + eps)
        wv = jnp.sum(w2d * v, axis=1, keepdims=True)            # (OC, 1) = W v
        u = wv / (jnp.sqrt(jnp.sum(wv * wv)) + eps)
    wv = jnp.sum(w2d * v, axis=1, keepdims=True)                # (OC, 1)
    sigma = jnp.sum(u * wv)                                     # u . (W v)
    inv_sigma = 1.0 / sigma

    # Written with identical values every grid step (idempotent), so the
    # constant-index u/v output blocks stay correct even when the "parallel"
    # batch axis is split across TensorCores.
    u_out_ref[...] = u.astype(u_out_ref.dtype)
    v_out_ref[...] = v.astype(v_out_ref.dtype)

    # ---- 3x3 stride-1 'same' conv as ONE im2col matmul, produced directly in
    # (OC, H*W) orientation (lane dim = H*W) so stores are lane-dense and the
    # result is already NCHW.
    wn = wm_ref[...].astype(jnp.float32) * inv_sigma            # (OC, KH*KW*C)
    taps = []
    for ky in range(KH):
        for kx in range(KW):
            taps.append(x_ref[0, ky:ky + H, kx:kx + W, :])      # (H, W, C)
    pmat = jnp.concatenate(taps, axis=-1).reshape(H * W, KH * KW * C)
    # NT matmul (contract both minor dims): (OC, K) x (H*W, K) -> (OC, H*W)
    out = lax.dot_general(wn, pmat, (((1,), (1,)), ((), ())),
                          preferred_element_type=jnp.float32)
    out = out + b_ref[...]                                      # + (OC, 1) bias

    # Fused Conv2dBlock activation epilogue (static choice).
    if activation == "relu":
        out = jnp.maximum(out, 0.0)
    elif activation == "lrelu":
        out = jnp.where(out > 0.0, out, 0.2 * out)
    elif activation == "tanh":
        out = jnp.tanh(out)
    # "none": pass through

    o_ref[0] = out.astype(o_ref.dtype)


# ----------------------------------------------------------------------------
# Wrapper: SpectralNorm(nn.Conv2d(C, OC, 3, stride=1)) on ZeroPad2d(1)(x)
# ----------------------------------------------------------------------------
def spectral_norm_conv_forward(x_nchw, w_bar_oihw, bias, u, v,
                               power_iterations=1, eps=1e-12,
                               activation="none"):
    """x_nchw: (N,C,H,W), w_bar_oihw: (OC,C,KH,KW), bias: (OC,),
    u: (OC,1), v: (1,C*KH*KW) -> (out (N,OC,H,W), u_new, v_new)."""
    N, C, H, W = x_nchw.shape
    OC, C2, KH, KW = w_bar_oihw.shape
    assert C2 == C
    assert activation in ("none", "relu", "lrelu", "tanh")
    Wd = C * KH * KW
    pad = 1  # ZeroPad2d(1) + 3x3 stride-1 conv ("same")

    # Tiny weight views: PyTorch order for the power iteration, patch (HWIO)
    # order for the im2col matmul.  Both are (OC, 36) here — negligible.
    w2d = w_bar_oihw.reshape(OC, Wd)
    wm = jnp.transpose(w_bar_oihw, (0, 2, 3, 1)).reshape(OC, KH * KW * C)
    b2d = bias.reshape(OC, 1).astype(jnp.float32)

    # Glue: NCHW -> zero-padded NHWC (lane dim = channels).  The kernel emits
    # (OC, H*W) blocks, i.e. NCHW directly, so there is NO output transpose.
    # TODO(synk): handle the 1-pixel halo in-kernel (masked edge taps /
    # element-offset BlockSpecs) and add a row-tile grid axis for large H so
    # the padded copy and whole-image blocks are not needed on v7x (64 MiB VMEM).
    x_nhwc = jnp.transpose(x_nchw, (0, 2, 3, 1))
    x_pad = jnp.pad(x_nhwc, ((0, 0), (pad, pad), (pad, pad), (0, 0)))
    Hp, Wp = H + 2 * pad, W + 2 * pad

    kernel = functools.partial(
        _sn_conv_kernel, H=H, W=W, KH=KH, KW=KW,
        power_iterations=power_iterations, eps=eps, activation=activation)

    out, u_new, v_new = pl.pallas_call(
        kernel,
        grid=(N,),
        in_specs=[
            pl.BlockSpec((OC, Wd), lambda n: (0, 0)),              # w2d
            pl.BlockSpec((OC, KH * KW * C), lambda n: (0, 0)),     # wm
            pl.BlockSpec((OC, 1), lambda n: (0, 0)),               # u
            pl.BlockSpec((1, Wd), lambda n: (0, 0)),               # v
            pl.BlockSpec((OC, 1), lambda n: (0, 0)),               # bias
            pl.BlockSpec((1, Hp, Wp, C), lambda n: (n, 0, 0, 0)),  # x (padded NHWC)
        ],
        out_specs=[
            pl.BlockSpec((1, OC, H * W), lambda n: (n, 0, 0)),     # conv out (lane-dense)
            pl.BlockSpec((OC, 1), lambda n: (0, 0)),               # u_new
            pl.BlockSpec((1, Wd), lambda n: (0, 0)),               # v_new
        ],
        out_shape=(
            jax.ShapeDtypeStruct((N, OC, H * W), jnp.float32),
            jax.ShapeDtypeStruct((OC, 1), jnp.float32),
            jax.ShapeDtypeStruct((1, Wd), jnp.float32),
        ),
        compiler_params=pltpu.CompilerParams(
            dimension_semantics=("parallel",)),
    )(w2d, wm, u, v, b2d, x_pad)

    # Free (contiguous) reshape: (N, OC, H*W) -> (N, OC, H, W) == NCHW.
    return out.reshape(N, OC, H, W), u_new, v_new


def _l2normalize(x, eps=1e-12):
    return x / (jnp.linalg.norm(x) + eps)


if __name__ == "__main__":
    # Wrapped module: nn.Conv2d(4, 8, 3, stride=1) after ZeroPad2d(1),
    # input x: (2, 4, 16, 16).
    N, C, H, W = 2, 4, 16, 16
    OC, KH, KW = 8, 3, 3

    key = jax.random.PRNGKey(0)
    kw, kb, ku, kv, kx = jax.random.split(key, 5)

    w_bar = jax.random.normal(kw, (OC, C, KH, KW), jnp.float32) * 0.1
    bias = jax.random.normal(kb, (OC,), jnp.float32) * 0.1
    u = _l2normalize(jax.random.normal(ku, (OC,), jnp.float32)).reshape(OC, 1)
    v = _l2normalize(
        jax.random.normal(kv, (C * KH * KW,), jnp.float32)).reshape(1, C * KH * KW)
    x = jax.random.normal(kx, (N, C, H, W), jnp.float32)

    out, u_new, v_new = spectral_norm_conv_forward(x, w_bar, bias, u, v)
    out = jax.block_until_ready(out)

    # pure-JAX reference
    eps = 1e-12
    w2d = w_bar.reshape(OC, -1)
    v_r = _l2normalize(w2d.T @ u.reshape(-1), eps)
    u_r = _l2normalize(w2d @ v_r, eps)
    sigma = jnp.dot(u_r, w2d @ v_r)
    w_norm_ref = (w2d / sigma).reshape(OC, C, KH, KW)
    out_ref = lax.conv_general_dilated(
        x, w_norm_ref, window_strides=(1, 1), padding=((1, 1), (1, 1)),
        dimension_numbers=("NCHW", "OIHW", "NCHW")) + bias.reshape(1, OC, 1, 1)

    assert out.shape == (N, OC, H, W)
    assert jnp.allclose(out, out_ref, atol=1e-4, rtol=1e-4), (
        float(jnp.max(jnp.abs(out - out_ref))))
    assert jnp.allclose(u_new.ravel(), u_r, atol=1e-5, rtol=1e-5)
    assert jnp.allclose(v_new.ravel(), v_r, atol=1e-5, rtol=1e-5)

    # Conv2dBlock's default activation='relu' as a fused in-kernel epilogue.
    out_relu, _, _ = spectral_norm_conv_forward(
        x, w_bar, bias, u, v, activation="relu")
    out_relu = jax.block_until_ready(out_relu)
    assert jnp.allclose(out_relu, jnp.maximum(out_ref, 0.0),
                        atol=1e-4, rtol=1e-4)

    print("KERNEL_OK")
</pallas_src>

<mosaic_0001>
module attributes {stable_mosaic.version = 11 : i64} {
  func.func @_sn_conv_kernel(%arg0: i32, %arg1: memref<8x36xf32, #tpu.memory_space<vmem>>, %arg2: memref<8x36xf32, #tpu.memory_space<vmem>>, %arg3: memref<8x1xf32, #tpu.memory_space<vmem>>, %arg4: memref<1x36xf32, #tpu.memory_space<vmem>>, %arg5: memref<8x1xf32, #tpu.memory_space<vmem>>, %arg6: memref<1x18x18x4xf32, #tpu.memory_space<vmem>>, %arg7: memref<1x8x256xf32, #tpu.memory_space<vmem>>, %arg8: memref<8x1xf32, #tpu.memory_space<vmem>>, %arg9: memref<1x36xf32, #tpu.memory_space<vmem>>) attributes {dimension_semantics = [#tpu.dimension_semantics<parallel>], iteration_bounds = array<i64: 2>, scalar_prefetch = 0 : i64, scratch_operands = 0 : i64, tpu.core_type = #tpu.core_type<tc>, window_params = [{pipeline_mode = #tpu.pipeline_mode<synchronous>, transform_indices = @transform_0, window_bounds = array<i64: 8, 36>}, {pipeline_mode = #tpu.pipeline_mode<synchronous>, transform_indices = @transform_1, window_bounds = array<i64: 8, 36>}, {pipeline_mode = #tpu.pipeline_mode<synchronous>, transform_indices = @transform_2, window_bounds = array<i64: 8, 1>}, {pipeline_mode = #tpu.pipeline_mode<synchronous>, transform_indices = @transform_3, window_bounds = array<i64: 1, 36>}, {pipeline_mode = #tpu.pipeline_mode<synchronous>, transform_indices = @transform_4, window_bounds = array<i64: 8, 1>}, {transform_indices = @transform_5, window_bounds = array<i64: 1, 18, 18, 4>}, {transform_indices = @transform_6, window_bounds = array<i64: 1, 8, 256>}, {pipeline_mode = #tpu.pipeline_mode<synchronous>, transform_indices = @transform_7, window_bounds = array<i64: 8, 1>}, {pipeline_mode = #tpu.pipeline_mode<synchronous>, transform_indices = @transform_8, window_bounds = array<i64: 1, 36>}]} {
    %c0 = arith.constant 0 : index
    %c0_0 = arith.constant 0 : index
    %0 = vector.load %arg1[%c0, %c0_0] : memref<8x36xf32, #tpu.memory_space<vmem>>, vector<8x36xf32>
    %c0_1 = arith.constant 0 : index
    %c0_2 = arith.constant 0 : index
    %1 = vector.load %arg3[%c0_1, %c0_2] : memref<8x1xf32, #tpu.memory_space<vmem>>, vector<8x1xf32>
    %2 = vector.broadcast %1 : vector<8x1xf32> to vector<8x36xf32>
    %3 = arith.mulf %0, %2 : vector<8x36xf32>
    %cst = arith.constant dense<0.000000e+00> : vector<36xf32>
    %4 = vector.multi_reduction <add>, %3, %cst [0] : vector<8x36xf32> to vector<36xf32>
    %5 = vector.shape_cast %4 : vector<36xf32> to vector<1x36xf32>
    %6 = arith.mulf %5, %5 : vector<1x36xf32>
    %7 = vector.shape_cast %6 : vector<1x36xf32> to vector<1x1x36xf32>
    %cst_3 = arith.constant dense<0.000000e+00> : vector<1xf32>
    %8 = vector.multi_reduction <add>, %7, %cst_3 [1, 2] : vector<1x1x36xf32> to vector<1xf32>
    %9 = vector.shape_cast %8 : vector<1xf32> to vector<1x1x1xf32>
    %10 = vector.extract %9[0, 0, 0] : f32 from vector<1x1x1xf32>
    %11 = math.sqrt %10 : f32
    %cst_4 = arith.constant 9.99999996E-13 : f32
    %12 = arith.addf %11, %cst_4 : f32
    %13 = vector.broadcast %12 : f32 to vector<1x36xf32>
    %14 = arith.divf %5, %13 : vector<1x36xf32>
    %15 = vector.broadcast %14 : vector<1x36xf32> to vector<8x36xf32>
    %16 = arith.mulf %0, %15 : vector<8x36xf32>
    %cst_5 = arith.constant dense<0.000000e+00> : vector<8xf32>
    %17 = vector.multi_reduction <add>, %16, %cst_5 [1] : vector<8x36xf32> to vector<8xf32>
    %18 = vector.shape_cast %17 : vector<8xf32> to vector<8x1xf32>
    %19 = arith.mulf %18, %18 : vector<8x1xf32>
    %20 = vector.shape_cast %19 : vector<8x1xf32> to vector<1x8x1xf32>
    %cst_6 = arith.constant dense<0.000000e+00> : vector<1xf32>
    %21 = vector.multi_reduction <add>, %20, %cst_6 [1, 2] : vector<1x8x1xf32> to vector<1xf32>
    %22 = vector.shape_cast %21 : vector<1xf32> to vector<1x1x1xf32>
    %23 = vector.extract %22[0, 0, 0] : f32 from vector<1x1x1xf32>
    %24 = math.sqrt %23 : f32
    %cst_7 = arith.constant 9.99999996E-13 : f32
    %25 = arith.addf %24, %cst_7 : f32
    %26 = vector.broadcast %25 : f32 to vector<8x1xf32>
    %27 = arith.divf %18, %26 : vector<8x1xf32>
    %28 = vector.broadcast %14 : vector<1x36xf32> to vector<8x36xf32>
    %29 = arith.mulf %0, %28 : vector<8x36xf32>
    %cst_8 = arith.constant dense<0.000000e+00> : vector<8xf32>
    %30 = vector.multi_reduction <add>, %29, %cst_8 [1] : vector<8x36xf32> to vector<8xf32>
    %31 = vector.shape_cast %30 : vector<8xf32> to vector<8x1xf32>
    %32 = arith.mulf %27, %31 : vector<8x1xf32>
    %33 = vector.shape_cast %32 : vector<8x1xf32> to vector<1x8x1xf32>
    %cst_9 = arith.constant dense<0.000000e+00> : vector<1xf32>
    %34 = vector.multi_reduction <add>, %33, %cst_9 [1, 2] : vector<1x8x1xf32> to vector<1xf32>
    %35 = vector.shape_cast %34 : vector<1xf32> to vector<1x1x1xf32>
    %36 = vector.extract %35[0, 0, 0] : f32 from vector<1x1x1xf32>
    %cst_10 = arith.constant 1.000000e+00 : f32
    %37 = arith.divf %cst_10, %36 : f32
    %c0_11 = arith.constant 0 : index
    %c0_12 = arith.constant 0 : index
    %38 = vector.load %arg8[%c0_11, %c0_12] : memref<8x1xf32, #tpu.memory_space<vmem>>, vector<8x1xf32>
    tpu.vector_store %arg8[%c0_11, %c0_12], %27 {strides = array<i32>} : memref<8x1xf32, #tpu.memory_space<vmem>>, vector<8x1xf32>,
    %c0_13 = arith.constant 0 : index
    %c0_14 = arith.constant 0 : index
    %39 = vector.load %arg9[%c0_13, %c0_14] : memref<1x36xf32, #tpu.memory_space<vmem>>, vector<1x36xf32>
    tpu.vector_store %arg9[%c0_13, %c0_14], %14 {strides = array<i32>} : memref<1x36xf32, #tpu.memory_space<vmem>>, vector<1x36xf32>,
    %c0_15 = arith.constant 0 : index
    %c0_16 = arith.constant 0 : index
    %40 = vector.load %arg2[%c0_15, %c0_16] : memref<8x36xf32, #tpu.memory_space<vmem>>, vector<8x36xf32>
    %41 = vector.broadcast %37 : f32 to vector<8x36xf32>
    %42 = arith.mulf %40, %41 : vector<8x36xf32>
    %c0_17 = arith.constant 0 : index
    %c0_18 = arith.constant 0 : index
    %c0_19 = arith.constant 0 : index
    %c0_20 = arith.constant 0 : index
    %43 = vector.load %arg6[%c0_17, %c0_18, %c0_19, %c0_20] : memref<1x18x18x4xf32, #tpu.memory_space<vmem>>, vector<1x16x16x4xf32>
    %44 = vector.shape_cast %43 : vector<1x16x16x4xf32> to vector<16x16x4xf32>
    %c0_21 = arith.constant 0 : index
    %c0_22 = arith.constant 0 : index
    %c1 = arith.constant 1 : index
    %c0_23 = arith.constant 0 : index
    %45 = vector.load %arg6[%c0_21, %c0_22, %c1, %c0_23] : memref<1x18x18x4xf32, #tpu.memory_space<vmem>>, vector<1x16x16x4xf32>
    %46 = vector.shape_cast %45 : vector<1x16x16x4xf32> to vector<16x16x4xf32>
    %c0_24 = arith.constant 0 : index
    %c0_25 = arith.constant 0 : index
    %c2 = arith.constant 2 : index
    %c0_26 = arith.constant 0 : index
    %47 = vector.load %arg6[%c0_24, %c0_25, %c2, %c0_26] : memref<1x18x18x4xf32, #tpu.memory_space<vmem>>, vector<1x16x16x4xf32>
    %48 = vector.shape_cast %47 : vector<1x16x16x4xf32> to vector<16x16x4xf32>
    %c0_27 = arith.constant 0 : index
    %c1_28 = arith.constant 1 : index
    %c0_29 = arith.constant 0 : index
    %c0_30 = arith.constant 0 : index
    %49 = vector.load %arg6[%c0_27, %c1_28, %c0_29, %c0_30] : memref<1x18x18x4xf32, #tpu.memory_space<vmem>>, vector<1x16x16x4xf32>
    %50 = vector.shape_cast %49 : vector<1x16x16x4xf32> to vector<16x16x4xf32>
    %c0_31 = arith.constant 0 : index
    %c1_32 = arith.constant 1 : index
    %c1_33 = arith.constant 1 : index
    %c0_34 = arith.constant 0 : index
    %51 = vector.load %arg6[%c0_31, %c1_32, %c1_33, %c0_34] : memref<1x18x18x4xf32, #tpu.memory_space<vmem>>, vector<1x16x16x4xf32>
    %52 = vector.shape_cast %51 : vector<1x16x16x4xf32> to vector<16x16x4xf32>
    %c0_35 = arith.constant 0 : index
    %c1_36 = arith.constant 1 : index
    %c2_37 = arith.constant 2 : index
    %c0_38 = arith.constant 0 : index
    %53 = vector.load %arg6[%c0_35, %c1_36, %c2_37, %c0_38] : memref<1x18x18x4xf32, #tpu.memory_space<vmem>>, vector<1x16x16x4xf32>
    %54 = vector.shape_cast %53 : vector<1x16x16x4xf32> to vector<16x16x4xf32>
    %c0_39 = arith.constant 0 : index
    %c2_40 = arith.constant 2 : index
    %c0_41 = arith.constant 0 : index
    %c0_42 = arith.constant 0 : index
    %55 = vector.load %arg6[%c0_39, %c2_40, %c0_41, %c0_42] : memref<1x18x18x4xf32, #tpu.memory_space<vmem>>, vector<1x16x16x4xf32>
    %56 = vector.shape_cast %55 : vector<1x16x16x4xf32> to vector<16x16x4xf32>
    %c0_43 = arith.constant 0 : index
    %c2_44 = arith.constant 2 : index
    %c1_45 = arith.constant 1 : index
    %c0_46 = arith.constant 0 : index
    %57 = vector.load %arg6[%c0_43, %c2_44, %c1_45, %c0_46] : memref<1x18x18x4xf32, #tpu.memory_space<vmem>>, vector<1x16x16x4xf32>
    %58 = vector.shape_cast %57 : vector<1x16x16x4xf32> to vector<16x16x4xf32>
    %c0_47 = arith.constant 0 : index
    %c2_48 = arith.constant 2 : index
    %c2_49 = arith.constant 2 : index
    %c0_50 = arith.constant 0 : index
    %59 = vector.load %arg6[%c0_47, %c2_48, %c2_49, %c0_50] : memref<1x18x18x4xf32, #tpu.memory_space<vmem>>, vector<1x16x16x4xf32>
    %60 = vector.shape_cast %59 : vector<1x16x16x4xf32> to vector<16x16x4xf32>
    %61 = tpu.concatenate %44, %46, %48, %50, %52, %54, %56, %58, %60 in 2 : vector<16x16x4xf32>, vector<16x16x4xf32>, vector<16x16x4xf32>, vector<16x16x4xf32>, vector<16x16x4xf32>, vector<16x16x4xf32>, vector<16x16x4xf32>, vector<16x16x4xf32>, vector<16x16x4xf32> -> vector<16x16x36xf32>
    %62 = vector.shape_cast %61 : vector<16x16x36xf32> to vector<256x36xf32>
    %cst_51 = arith.constant dense<0.000000e+00> : vector<8x256xf32>
    %63 = tpu.matmul %42, %62, %cst_51 {dimension_numbers = #tpu.dot_dimension_numbers<[1], [1], [0], [0], [0, 0, 1, 0], [], []>} : vector<8x36xf32>, vector<256x36xf32>, vector<8x256xf32> -> vector<8x256xf32>
    %c0_52 = arith.constant 0 : index
    %c0_53 = arith.constant 0 : index
    %64 = vector.load %arg5[%c0_52, %c0_53] : memref<8x1xf32, #tpu.memory_space<vmem>>, vector<8x1xf32>
    %65 = vector.broadcast %64 : vector<8x1xf32> to vector<8x256xf32>
    %66 = arith.addf %63, %65 : vector<8x256xf32>
    %c0_54 = arith.constant 0 : index
    %c0_55 = arith.constant 0 : index
    %c0_56 = arith.constant 0 : index
    %67 = vector.load %arg7[%c0_54, %c0_55, %c0_56] : memref<1x8x256xf32, #tpu.memory_space<vmem>>, vector<1x8x256xf32>
    %68 = vector.shape_cast %67 : vector<1x8x256xf32> to vector<8x256xf32>
    %69 = vector.shape_cast %66 : vector<8x256xf32> to vector<1x8x256xf32>
    tpu.vector_store %arg7[%c0_54, %c0_55, %c0_56], %69 {strides = array<i32>} : memref<1x8x256xf32, #tpu.memory_space<vmem>>, vector<1x8x256xf32>,
    return
  }
  func.func @transform_0(%arg0: i32) -> (i32, i32) {
    %c0_i32 = arith.constant 0 : i32
    %c0_i32_0 = arith.constant 0 : i32
    %c0_i32_1 = arith.constant 0 : i32
    return %c0_i32, %c0_i32_0 : i32, i32
  }
  func.func @transform_1(%arg0: i32) -> (i32, i32) {
    %c0_i32 = arith.constant 0 : i32
    %c0_i32_0 = arith.constant 0 : i32
    %c0_i32_1 = arith.constant 0 : i32
    return %c0_i32, %c0_i32_0 : i32, i32
  }
  func.func @transform_2(%arg0: i32) -> (i32, i32) {
    %c0_i32 = arith.constant 0 : i32
    %c0_i32_0 = arith.constant 0 : i32
    %c0_i32_1 = arith.constant 0 : i32
    return %c0_i32, %c0_i32_0 : i32, i32
  }
  func.func @transform_3(%arg0: i32) -> (i32, i32) {
    %c0_i32 = arith.constant 0 : i32
    %c0_i32_0 = arith.constant 0 : i32
    %c0_i32_1 = arith.constant 0 : i32
    return %c0_i32, %c0_i32_0 : i32, i32
  }
  func.func @transform_4(%arg0: i32) -> (i32, i32) {
    %c0_i32 = arith.constant 0 : i32
    %c0_i32_0 = arith.constant 0 : i32
    %c0_i32_1 = arith.constant 0 : i32
    return %c0_i32, %c0_i32_0 : i32, i32
  }
  func.func @transform_5(%arg0: i32) -> (i32, i32, i32, i32) {
    %c0_i32 = arith.constant 0 : i32
    %c0_i32_0 = arith.constant 0 : i32
    %c0_i32_1 = arith.constant 0 : i32
    %c0_i32_2 = arith.constant 0 : i32
    return %arg0, %c0_i32, %c0_i32_0, %c0_i32_1 : i32, i32, i32, i32
  }
  func.func @transform_6(%arg0: i32) -> (i32, i32, i32) {
    %c0_i32 = arith.constant 0 : i32
    %c0_i32_0 = arith.constant 0 : i32
    %c0_i32_1 = arith.constant 0 : i32
    return %arg0, %c0_i32, %c0_i32_0 : i32, i32, i32
  }
  func.func @transform_7(%arg0: i32) -> (i32, i32) {
    %c0_i32 = arith.constant 0 : i32
    %c0_i32_0 = arith.constant 0 : i32
    %c0_i32_1 = arith.constant 0 : i32
    return %c0_i32, %c0_i32_0 : i32, i32
  }
  func.func @transform_8(%arg0: i32) -> (i32, i32) {
    %c0_i32 = arith.constant 0 : i32
    %c0_i32_0 = arith.constant 0 : i32
    %c0_i32_1 = arith.constant 0 : i32
    return %c0_i32, %c0_i32_0 : i32, i32
  }
}

</mosaic_0001>

<llo_original>
// kernel: tpu_custom_call.1
$region0: #{tpu_custom_call.1}
  #allocation0 [shape = 'u32[]', space=smem, size = 0x4, offset = 0x4, fixed_abs, tag = 'smem constant byte address 0x4 - core index']
  #allocation1 [shape = 'u32[72,128]{1,0:T(1,128)}', space=vmem, size = 0x9000, scoped, tag = 'internal scratch']
  %s0 = inlined_call_operand.vmem [shape: f32[8,36], index: 0, kind: input, shape index: {}]
  %s1 = inlined_call_operand.vmem [shape: f32[8,36], index: 1, kind: input, shape index: {}]
  %s2 = inlined_call_operand.vmem [shape: f32[8,1], index: 2, kind: input, shape index: {}]
  %s3 = inlined_call_operand.vmem [shape: f32[1,36], index: 3, kind: input, shape index: {}]
  %s4 = inlined_call_operand.vmem [shape: f32[8,1], index: 4, kind: input, shape index: {}]
  %s5 = inlined_call_operand.vmem [shape: f32[2,18,18,4], index: 5, kind: input, shape index: {}]
  %s6 = inlined_call_operand.hbm [shape: f32[2,8,256], index: 6, kind: output, shape index: {0}]
  %s7 = inlined_call_operand.vmem [shape: f32[8,1], index: 7, kind: output, shape index: {1}]
  %s8 = inlined_call_operand.hbm [shape: f32[1,36], index: 8, kind: output, shape index: {2}]
  %9 = xla_tuple %s6, %s7, %s8
  %s10 = sld [smem:[#allocation0]]
  $region73: #{tpu_custom_call.1} parent=0
    _
  %s12 = ssub.s32 1, %s10
  %s13 = scalar_select 0, %s12, %s10
  $region1: #{tpu_custom_call.1} parent=0
    #allocation2 [shape = 'u8[16384]{0}', space=vmem, size = 0x4000, scoped, tag = 'output window, operand 0']
    #allocation3 [shape = 's32[2]{0}', space=sflag, size = 0x8, scoped, tag = 'scoped memory for tpu_custom_call.1']
    #allocation4 [shape = 'u8[512]{0}', space=vmem, size = 0x400, scoped, tag = 'output window, operand 2, single buffered']
    #allocation5 [shape = 's32[1]{0}', space=sflag, size = 0x4, scoped, tag = 'scoped memory for tpu_custom_call.1']
    %14 = vsyncpa [#allocation3], 0
    %s15 = scalar_lea.sflag [#allocation3], 1
    %16 = vsyncpa %s15, 0
    %17 = vsyncpa [#allocation5], 0
    loop: start=0, step=1, limit=4
    $region2: #{tpu_custom_call.1} parent=1 // loop_pre_header
      _
    $region3: #{tpu_custom_call.1} parent=1 // loop_header
      %s19 = sphi 0, %s23
      %p20 = scmp.ge.s32.totalorder %s19, 4
      %s27 = sphi 0, %s27
      %s29 = sphi 0, %s27
      %s30 = sphi 0, %s29
      %s44 = sphi 0, %s30
      %s48 = sphi 0, %s48
      %s50 = sphi 0, %s48
      %s51 = sphi 0, %s50
      %s65 = sphi 0, %s51
      %s69 = sphi 0, %s69
      %s71 = sphi 0, %s69
      %s72 = sphi 0, %s71
      %s86 = sphi 0, %s72
      %s90 = sphi 0, %s90
      %s92 = sphi 0, %s90
      %s93 = sphi 0, %s92
      %s107 = sphi 0, %s93
      %s111 = sphi 0, %s111
      %s113 = sphi 0, %s111
      %s114 = sphi 0, %s113
      %s128 = sphi 0, %s114
      %s134 = sphi 0, %s136
      %s137 = sphi 0, %s134
      %s138 = sphi 0, %s137
      %s154 = sphi 0, %s138
      %s160 = sphi 0, %s162
      %s163 = sphi 0, %s160
      %s164 = sphi 0, %s163
      %s180 = sphi 0, %s164
      %s184 = sphi 0, %s184
      %s186 = sphi 0, %s184
      %s187 = sphi 0, %s186
      %s201 = sphi 0, %s187
      %s205 = sphi 0, %s205
      %s207 = sphi 0, %s205
      %s208 = sphi 0, %s207
      %s222 = sphi 0, %s208
    $region4: #{tpu_custom_call.1} parent=1 // loop_header_branch
      %22 = sbr.rel (%p20) target = $region8
    $region5: #{tpu_custom_call.1} parent=1 // loop_body
      %s24 = ssub.s32 %s19, 1
      %s25 = ssub.s32 %s19, 2
      %s26 = sadd.s32 %s19, 1
      %s28 = sadd.s32 %s27, 1
      %p31 = scmp.eq.s32.totalorder %s19, 1
      %p32 = scmp.ne.s32.totalorder %s27, %s29
      %p33 = scmp.eq.s32.totalorder %s19, 0
      %p34 = por %p32, %p33
      %p35 = scmp.ne.s32.totalorder %s27, %s29
      %p36 = scmp.eq.s32.totalorder %s24, 1
      %p37 = por %p35, %p36
      %p38 = scmp.ne.s32.totalorder %s29, %s30
      %p39 = scmp.eq.s32.totalorder %s24, 0
      %p40 = por %p38, %p39
      %p41 = scmp.ne.s32.totalorder %s29, %s30
      %p42 = scmp.eq.s32.totalorder %s25, 1
      %p43 = por %p41, %p42
      %p45 = scmp.ne.s32.totalorder %s30, %s44
      %p46 = scmp.eq.s32.totalorder %s25, 0
      %p47 = por %p45, %p46
      %s49 = sadd.s32 %s48, 1
      %p52 = scmp.eq.s32.totalorder %s19, 1
      %p53 = scmp.ne.s32.totalorder %s48, %s50
      %p54 = scmp.eq.s32.totalorder %s19, 0
      %p55 = por %p53, %p54
      %p56 = scmp.ne.s32.totalorder %s48, %s50
      %p57 = scmp.eq.s32.totalorder %s24, 1
      %p58 = por %p56, %p57
      %p59 = scmp.ne.s32.totalorder %s50, %s51
      %p60 = scmp.eq.s32.totalorder %s24, 0
      %p61 = por %p59, %p60
      %p62 = scmp.ne.s32.totalorder %s50, %s51
      %p63 = scmp.eq.s32.totalorder %s25, 1
      %p64 = por %p62, %p63
      %p66 = scmp.ne.s32.totalorder %s51, %s65
      %p67 = scmp.eq.s32.totalorder %s25, 0
      %p68 = por %p66, %p67
      %s70 = sadd.s32 %s69, 1
      %p73 = scmp.eq.s32.totalorder %s19, 1
      %p74 = scmp.ne.s32.totalorder %s69, %s71
      %p75 = scmp.eq.s32.totalorder %s19, 0
      %p76 = por %p74, %p75
      %p77 = scmp.ne.s32.totalorder %s69, %s71
      %p78 = scmp.eq.s32.totalorder %s24, 1
      %p79 = por %p77, %p78
      %p80 = scmp.ne.s32.totalorder %s71, %s72
      %p81 = scmp.eq.s32.totalorder %s24, 0
      %p82 = por %p80, %p81
      %p83 = scmp.ne.s32.totalorder %s71, %s72
      %p84 = scmp.eq.s32.totalorder %s25, 1
      %p85 = por %p83, %p84
      %p87 = scmp.ne.s32.totalorder %s72, %s86
      %p88 = scmp.eq.s32.totalorder %s25, 0
      %p89 = por %p87, %p88
      %s91 = sadd.s32 %s90, 1
      %p94 = scmp.eq.s32.totalorder %s19, 1
      %p95 = scmp.ne.s32.totalorder %s90, %s92
      %p96 = scmp.eq.s32.totalorder %s19, 0
      %p97 = por %p95, %p96
      %p98 = scmp.ne.s32.totalorder %s90, %s92
      %p99 = scmp.eq.s32.totalorder %s24, 1
      %p100 = por %p98, %p99
      %p101 = scmp.ne.s32.totalorder %s92, %s93
      %p102 = scmp.eq.s32.totalorder %s24, 0
      %p103 = por %p101, %p102
      %p104 = scmp.ne.s32.totalorder %s92, %s93
      %p105 = scmp.eq.s32.totalorder %s25, 1
      %p106 = por %p104, %p105
      %p108 = scmp.ne.s32.totalorder %s93, %s107
      %p109 = scmp.eq.s32.totalorder %s25, 0
      %p110 = por %p108, %p109
      %s112 = sadd.s32 %s111, 1
      %p115 = scmp.eq.s32.totalorder %s19, 1
      %p116 = scmp.ne.s32.totalorder %s111, %s113
      %p117 = scmp.eq.s32.totalorder %s19, 0
      %p118 = por %p116, %p117
      %p119 = scmp.ne.s32.totalorder %s111, %s113
      %p120 = scmp.eq.s32.totalorder %s24, 1
      %p121 = por %p119, %p120
      %p122 = scmp.ne.s32.totalorder %s113, %s114
      %p123 = scmp.eq.s32.totalorder %s24, 0
      %p124 = por %p122, %p123
      %p125 = scmp.ne.s32.totalorder %s113, %s114
      %p126 = scmp.eq.s32.totalorder %s25, 1
      %p127 = por %p125, %p126
      %p129 = scmp.ne.s32.totalorder %s114, %s128
      %p130 = scmp.eq.s32.totalorder %s25, 0
      %p131 = por %p129, %p130
      %s132 = ssub.s32 %s19, %s26
      %p133 = scmp.eq.s32.totalorder %s132, 0
      %s135 = sadd.s32 %s134, 1
      %s136 = scalar_select %p133, %s134, %s135
      %p139 = pneg %p133
      %p140 = scmp.eq.s32.totalorder %s19, 1
      %p141 = por %p139, %p140
      %p142 = scmp.ne.s32.totalorder %s134, %s137
      %p143 = scmp.eq.s32.totalorder %s19, 0
      %p144 = por %p142, %p143
      %p145 = scmp.ne.s32.totalorder %s134, %s137
      %p146 = scmp.eq.s32.totalorder %s24, 1
      %p147 = por %p145, %p146
      %p148 = scmp.ne.s32.totalorder %s137, %s138
      %p149 = scmp.eq.s32.totalorder %s24, 0
      %p150 = por %p148, %p149
      %p151 = scmp.ne.s32.totalorder %s137, %s138
      %p152 = scmp.eq.s32.totalorder %s25, 1
      %p153 = por %p151, %p152
      %p155 = scmp.ne.s32.totalorder %s138, %s154
      %p156 = scmp.eq.s32.totalorder %s25, 0
      %p157 = por %p155, %p156
      %s158 = ssub.s32 %s19, %s26
      %p159 = scmp.eq.s32.totalorder %s158, 0
      %s161 = sadd.s32 %s160, 1
      %s162 = scalar_select %p159, %s160, %s161
      %p165 = pneg %p159
      %p166 = scmp.eq.s32.totalorder %s19, 1
      %p167 = por %p165, %p166
      %p168 = scmp.ne.s32.totalorder %s160, %s163
      %p169 = scmp.eq.s32.totalorder %s19, 0
      %p170 = por %p168, %p169
      %p171 = scmp.ne.s32.totalorder %s160, %s163
      %p172 = scmp.eq.s32.totalorder %s24, 1
      %p173 = por %p171, %p172
      %p174 = scmp.ne.s32.totalorder %s163, %s164
      %p175 = scmp.eq.s32.totalorder %s24, 0
      %p176 = por %p174, %p175
      %p177 = scmp.ne.s32.totalorder %s163, %s164
      %p178 = scmp.eq.s32.totalorder %s25, 1
      %p179 = por %p177, %p178
      %p181 = scmp.ne.s32.totalorder %s164, %s180
      %p182 = scmp.eq.s32.totalorder %s25, 0
      %p183 = por %p181, %p182
      %s185 = sadd.s32 %s184, 1
      %p188 = scmp.eq.s32.totalorder %s19, 1
      %p189 = scmp.ne.s32.totalorder %s184, %s186
      %p190 = scmp.eq.s32.totalorder %s19, 0
      %p191 = por %p189, %p190
      %p192 = scmp.ne.s32.totalorder %s184, %s186
      %p193 = scmp.eq.s32.totalorder %s24, 1
      %p194 = por %p192, %p193
      %p195 = scmp.ne.s32.totalorder %s186, %s187
      %p196 = scmp.eq.s32.totalorder %s24, 0
      %p197 = por %p195, %p196
      %p198 = scmp.ne.s32.totalorder %s186, %s187
      %p199 = scmp.eq.s32.totalorder %s25, 1
      %p200 = por %p198, %p199
      %p202 = scmp.ne.s32.totalorder %s187, %s201
      %p203 = scmp.eq.s32.totalorder %s25, 0
      %p204 = por %p202, %p203
      %s206 = sadd.s32 %s205, 1
      %p209 = scmp.eq.s32.totalorder %s19, 1
      %p210 = scmp.ne.s32.totalorder %s205, %s207
      %p211 = scmp.eq.s32.totalorder %s19, 0
      %p212 = por %p210, %p211
      %p213 = scmp.ne.s32.totalorder %s205, %s207
      %p214 = scmp.eq.s32.totalorder %s24, 1
      %p215 = por %p213, %p214
      %p216 = scmp.ne.s32.totalorder %s207, %s208
      %p217 = scmp.eq.s32.totalorder %s24, 0
      %p218 = por %p216, %p217
      %p219 = scmp.ne.s32.totalorder %s207, %s208
      %p220 = scmp.eq.s32.totalorder %s25, 1
      %p221 = por %p219, %p220
      %p223 = scmp.ne.s32.totalorder %s208, %s222
      %p224 = scmp.eq.s32.totalorder %s25, 0
      %p225 = por %p223, %p224
      %p226 = scmp.le.s32.totalorder 1, %s19
      %p227 = scmp.lt.s32.totalorder %s19, 3
      %p228 = pnand %p226, %p227
      %p229 = pneg %p228
      // Predicated region
      $region9: #{tpu_custom_call.1} parent=5 // pred_check
        _
      $region10: #{tpu_custom_call.1} parent=5 // pred_check_branch
        %231 = sbr.rel (%p228) target = $region12
      $region11: #{tpu_custom_call.1} parent=5 // pred_region
        %s232 = ssub.s32 %s19, 1
        // Predicated region
        $region13: #{tpu_custom_call.1} parent=11 // pred_check
          %p233 = pneg %p40
        $region14: #{tpu_custom_call.1} parent=11 // pred_check_branch
          %235 = sbr.rel (%p233) target = $region16
        $region15: #{tpu_custom_call.1} parent=11 // pred_region
          _
        $region16: #{tpu_custom_call.1} parent=11 // pred_fallthru
          _
        // Predicated region
        $region17: #{tpu_custom_call.1} parent=11 // pred_check
          %p236 = pneg %p61
        $region18: #{tpu_custom_call.1} parent=11 // pred_check_branch
          %238 = sbr.rel (%p236) target = $region20
        $region19: #{tpu_custom_call.1} parent=11 // pred_region
          _
        $region20: #{tpu_custom_call.1} parent=11 // pred_fallthru
          _
        // Predicated region
        $region21: #{tpu_custom_call.1} parent=11 // pred_check
          %p239 = pneg %p82
        $region22: #{tpu_custom_call.1} parent=11 // pred_check_branch
          %241 = sbr.rel (%p239) target = $region24
        $region23: #{tpu_custom_call.1} parent=11 // pred_region
          _
        $region24: #{tpu_custom_call.1} parent=11 // pred_fallthru
          _
        // Predicated region
        $region25: #{tpu_custom_call.1} parent=11 // pred_check
          %p242 = pneg %p103
        $region26: #{tpu_custom_call.1} parent=11 // pred_check_branch
          %244 = sbr.rel (%p242) target = $region28
        $region27: #{tpu_custom_call.1} parent=11 // pred_region
          _
        $region28: #{tpu_custom_call.1} parent=11 // pred_fallthru
          _
        // Predicated region
        $region29: #{tpu_custom_call.1} parent=11 // pred_check
          %p245 = pneg %p124
        $region30: #{tpu_custom_call.1} parent=11 // pred_check_branch
          %247 = sbr.rel (%p245) target = $region32
        $region31: #{tpu_custom_call.1} parent=11 // pred_region
          _
        $region32: #{tpu_custom_call.1} parent=11 // pred_fallthru
          _
      $region12: #{tpu_custom_call.1} parent=5 // pred_fallthru
        _
      %p248 = scmp.lt.s32.totalorder %s19, 2
      // Predicated region
      $region33: #{tpu_custom_call.1} parent=5 // pred_check
        %p249 = pneg %p248
      $region34: #{tpu_custom_call.1} parent=5 // pred_check_branch
        %251 = sbr.rel (%p249) target = $region36
      $region35: #{tpu_custom_call.1} parent=5 // pred_region
        // Predicated region
        $region37: #{tpu_custom_call.1} parent=35 // pred_check
          %p252 = pneg %p144
        $region38: #{tpu_custom_call.1} parent=35 // pred_check_branch
          %254 = sbr.rel (%p252) target = $region40
        $region39: #{tpu_custom_call.1} parent=35 // pred_region
          %p255 = scmp.lt.s32.totalorder %s19, 1
          %s256 = scalar_select %p255, %s19, 1
          %s257 = smul.addr %s256, 54
          %s258 = smul.addr %s257, 8
          %s259 = scalar_lea.vmem %s5, %s258
        $region40: #{tpu_custom_call.1} parent=35 // pred_fallthru
          _
      $region36: #{tpu_custom_call.1} parent=5 // pred_fallthru
        _
      %p260 = scmp.le.s32.totalorder 1, %s19
      %p261 = scmp.lt.s32.totalorder %s19, 3
      %p262 = pnand %p260, %p261
      %p263 = pneg %p262
      // Predicated region
      $region41: #{tpu_custom_call.1} parent=5 // pred_check
        _
      $region42: #{tpu_custom_call.1} parent=5 // pred_check_branch
        %265 = sbr.rel (%p262) target = $region44
      $region43: #{tpu_custom_call.1} parent=5 // pred_region
        %s266 = ssub.s32 %s19, 1
        %p267 = pneg %p40
        %p268 = pneg %p37
        %p269 = pneg %p61
        %p270 = pneg %p58
        %p271 = pneg %p82
        %p272 = pneg %p79
        %p273 = pneg %p103
        %p274 = pneg %p100
        %p275 = pneg %p124
        %p276 = pneg %p121
        %p277 = scmp.lt.s32.totalorder %s24, 1
        %s278 = scalar_select %p277, %s24, 1
        %s279 = smul.addr %s278, 54
        %s280 = smul.addr %s279, 8
        %s281 = scalar_lea.vmem %s5, %s280
        %p282 = pneg %p150
        %p283 = pneg %p147
        %p284 = pneg %p176
        %p285 = pneg %p173
        %s286 = sand.u32 %s163, 1
        %s287 = scalar_lea.sflag [#allocation3], %s286
        %s288 = sand.u32 %s163, 1
        %s289 = smul.addr %s288, 16
        %s290 = scalar_lea.vmem [#allocation2], %s289
        %p291 = pneg %p197
        %p292 = pneg %p194
        %p293 = pneg %p218
        %p294 = pneg %p215
        %p295 = scmp.lt.s32.totalorder %s24, 1
        %s296 = scalar_select %p295, %s24, 1
        %s297 = smul.addr %s296, 54
        %s298 = smul.addr %s297, 8
        %s299 = scalar_lea.vmem %s5, %s298
        %v300 = vld [vmem:[%s0] sm:$0xff]
        %v301 = vld [vmem:[%s2] sm:$0xff]
        %303 = vset.pattern.permute.xlu0 0
        %304 = vperm.xlu0 %303, %v301
        %v305 = vpop.permute.xlu0 %304
        %v307 = vmul.f32 %v300, %v305
        %vm308 = vcmask 293888
        %v309 = vsel %vm308, %v307, 0.0
        %v310 = vrot.slane %v309, 4
        %v311 = vadd.f32 %v309, %v310
        %v312 = vrot.slane %v311, 2
        %v313 = vadd.f32 %v311, %v312
        %v314 = vrot.slane %v313, 1
        %v315 = vadd.f32 %v313, %v314
        %v316 = vmul.f32 %v315, %v315
        %vm317 = vcmask 286720
        %v318 = vsel %vm317, %v316, 0.0
        %319 = vadd.xlane.f32.xlu0 %v318
        %v320 = vpop.xlane.xlu0 %319
        %v321 = vrot.slane %v320, 4
        %v322 = vadd.f32 %v320, %v321
        %v323 = vrot.slane %v322, 2
        %v324 = vadd.f32 %v322, %v323
        %v325 = vrot.slane %v324, 1
        %v326 = vadd.f32 %v324, %v325
        %s327 = vtos %v326
        %v328 = vstv %s327
        %v329 = vrsqrt.pop %v328
        %v330 = vmul.f32 %v329, %v328
        %v331 = vmul.f32 %v330, %v329
        %v332 = vmul.f32 0.5, %v331
        %v333 = vsub.f32 1.5, %v332
        %v334 = vmul.f32 %v329, %v333
        %v335 = vmul.f32 %v328, %v334
        %vm336 = vcmp.eq.f32.partialorder %v328, inf
        %v337 = vsel %vm336, %v328, %v335
        %vm338 = vcmp.eq.f32.partialorder %v328, 0.0
        %v339 = vand.u32 %v328, 2147483648
        %v340 = vsel %vm338, %v339, %v337
        %s341 = vtos %v340
        %s342 = sadd.f32 %s341, 1e-12
        %v343 = vstv %s342
        %v344 = vrcp.pop %v343
        %v345 = vmul.f32 %v343, %v344
        %v346 = vsub.f32 1.0, %v345
        %v347 = vmul.f32 %v344, %v346
        %v348 = vadd.f32 %v344, %v347
        %vm349 = vweird.f32 %v343
        %vm350 = vweird.f32 %v344
        %vm351 = vmor %vm349, %vm350
        %v352 = vsel %vm351, %v344, %v348
        %v353 = vand.u32 2147483647, %v343
        %vm354 = vcmp.eq.f32.partialorder %v353, 8.507059e+37
        %v355 = vand.u32 %v343, 2147483648
        %v356 = vor.u32 1.1754944e-38, %v355
        %v357 = vsel %vm354, %v356, %v352
        %v358 = vmul.f32 %v315, %v357
        %v359 = vmul.f32 %v300, %v358
        %v360 = vsel %vm308, %v359, 0.0
        %361 = vadd.xlane.f32.xlu0 %v360
        %v362 = vpop.xlane.xlu0 %361
        %v363 = vmul.f32 %v362, %v362
        %vm364 = vcmask 7168
        %v365 = vsel %vm364, %v363, 0.0
        %366 = vadd.xlane.f32.xlu0 %v365
        %v367 = vpop.xlane.xlu0 %366
        %v368 = vrot.slane %v367, 4
        %v369 = vadd.f32 %v367, %v368
        %v370 = vrot.slane %v369, 2
        %v371 = vadd.f32 %v369, %v370
        %v372 = vrot.slane %v371, 1
        %v373 = vadd.f32 %v371, %v372
        %s374 = vtos %v373
        %v375 = vstv %s374
        %v376 = vrsqrt.pop %v375
        %v377 = vmul.f32 %v376, %v375
        %v378 = vmul.f32 %v377, %v376
        %v379 = vmul.f32 0.5, %v378
        %v380 = vsub.f32 1.5, %v379
        %v381 = vmul.f32 %v376, %v380
        %v382 = vmul.f32 %v375, %v381
        %vm383 = vcmp.eq.f32.partialorder %v375, inf
        %v384 = vsel %vm383, %v375, %v382
        %vm385 = vcmp.eq.f32.partialorder %v375, 0.0
        %v386 = vand.u32 %v375, 2147483648
        %v387 = vsel %vm385, %v386, %v384
        %s388 = vtos %v387
        %s389 = sadd.f32 %s388, 1e-12
        %v390 = vstv %s389
        %v391 = vrcp.pop %v390
        %v392 = vmul.f32 %v390, %v391
        %v393 = vsub.f32 1.0, %v392
        %v394 = vmul.f32 %v391, %v393
        %v395 = vadd.f32 %v391, %v394
        %vm396 = vweird.f32 %v390
        %vm397 = vweird.f32 %v391
        %vm398 = vmor %vm396, %vm397
        %v399 = vsel %vm398, %v391, %v395
        %v400 = vand.u32 2147483647, %v390
        %vm401 = vcmp.eq.f32.partialorder %v400, 8.507059e+37
        %v402 = vand.u32 %v390, 2147483648
        %v403 = vor.u32 1.1754944e-38, %v402
        %v404 = vsel %vm401, %v403, %v399
        %v405 = vmul.f32 %v362, %v404
        %v406 = vmul.f32 %v405, %v362
        %v407 = vsel %vm364, %v406, 0.0
        %408 = vadd.xlane.f32.xlu0 %v407
        %v409 = vpop.xlane.xlu0 %408
        %v410 = vrot.slane %v409, 4
        %v411 = vadd.f32 %v409, %v410
        %v412 = vrot.slane %v411, 2
        %v413 = vadd.f32 %v411, %v412
        %v414 = vrot.slane %v413, 1
        %v415 = vadd.f32 %v413, %v414
        %s416 = vtos %v415
        %v417 = vstv %s416
        %v418 = vrcp.pop %v417
        %v419 = vmul.f32 %v417, %v418
        %v420 = vsub.f32 1.0, %v419
        %v421 = vmul.f32 %v418, %v420
        %v422 = vadd.f32 %v418, %v421
        %vm423 = vweird.f32 %v417
        %vm424 = vweird.f32 %v418
        %vm425 = vmor %vm423, %vm424
        %v426 = vsel %vm425, %v418, %v422
        %v427 = vand.u32 2147483647, %v417
        %vm428 = vcmp.eq.f32.partialorder %v427, 8.507059e+37
        %v429 = vand.u32 %v417, 2147483648
        %v430 = vor.u32 1.1754944e-38, %v429
        %v431 = vsel %vm428, %v430, %v426
        %s432 = vtos %v431
        %433 = vst.msk [vmem:[%s7] sm:$0xff] %vm364, %v405
        %434 = vst.msk [vmem:[#allocation4] sm:$0x1] %vm317, %v358
        %v435 = vld [vmem:[%s1] sm:$0xff]
        %v436 = vstv %s432
        %v437 = vmul.f32 %v435, %v436
        %v438 = vld [vmem:[%s299] sm:$0xff]
        %v439 = vld [vmem:[%s299 + $0x8] sm:$0xff]
        %v440 = vld [vmem:[%s299 + $0x18] sm:$0xff]
        %v441 = vld [vmem:[%s299 + $0x20] sm:$0xff]
        %v442 = vld [vmem:[%s299 + $0x30] sm:$0xff]
        %v443 = vld [vmem:[%s299 + $0x38] sm:$0xff]
        %v444 = vld [vmem:[%s299 + $0x48] sm:$0xff]
        %v445 = vld [vmem:[%s299 + $0x50] sm:$0xff]
        %v446 = vld [vmem:[%s299 + $0x60] sm:$0xff]
        %v447 = vld [vmem:[%s299 + $0x68] sm:$0xff]
        %v448 = vld [vmem:[%s299 + $0x78] sm:$0xff]
        %v449 = vld [vmem:[%s299 + $0x80] sm:$0xff]
        %v450 = vld [vmem:[%s299 + $0x90] sm:$0xff]
        %v451 = vld [vmem:[%s299 + $0x98] sm:$0xff]
        %v452 = vld [vmem:[%s299 + $0xa8] sm:$0xff]
        %v453 = vld [vmem:[%s299 + $0xb0] sm:$0xff]
        %v454 = vld [vmem:[%s299 + $0xc0] sm:$0xff]
        %v455 = vld [vmem:[%s299 + $0xc8] sm:$0xff]
        %v456 = vld [vmem:[%s299 + $0xd8] sm:$0xff]
        %v457 = vld [vmem:[%s299 + $0xe0] sm:$0xff]
        %v458 = vld [vmem:[%s299 + $0xf0] sm:$0xff]
        %v459 = vld [vmem:[%s299 + $0xf8] sm:$0xff]
        %v460 = vld [vmem:[%s299 + $0x108] sm:$0xff]
        %v461 = vld [vmem:[%s299 + $0x110] sm:$0xff]
        %v462 = vld [vmem:[%s299 + $0x120] sm:$0xff]
        %v463 = vld [vmem:[%s299 + $0x128] sm:$0xff]
        %v464 = vld [vmem:[%s299 + $0x138] sm:$0xff]
        %v465 = vld [vmem:[%s299 + $0x140] sm:$0xff]
        %v466 = vld [vmem:[%s299 + $0x150] sm:$0xff]
        %v467 = vld [vmem:[%s299 + $0x158] sm:$0xff]
        %v468 = vld [vmem:[%s299 + $0x168] sm:$0xff]
        %v469 = vld [vmem:[%s299 + $0x170] sm:$0xff]
        %v470 = vld [vmem:[%s299 + $0x1] sm:$0xff]
        %v471 = vld [vmem:[%s299 + $0x9] sm:$0xff]
        %v472 = vld [vmem:[%s299 + $0x19] sm:$0xff]
        %v473 = vld [vmem:[%s299 + $0x21] sm:$0xff]
        %v474 = vld [vmem:[%s299 + $0x31] sm:$0xff]
        %v475 = vld [vmem:[%s299 + $0x39] sm:$0xff]
        %v476 = vld [vmem:[%s299 + $0x49] sm:$0xff]
        %v477 = vld [vmem:[%s299 + $0x51] sm:$0xff]
        %v478 = vld [vmem:[%s299 + $0x61] sm:$0xff]
        %v479 = vld [vmem:[%s299 + $0x69] sm:$0xff]
        %v480 = vld [vmem:[%s299 + $0x79] sm:$0xff]
        %v481 = vld [vmem:[%s299 + $0x81] sm:$0xff]
        %v482 = vld [vmem:[%s299 + $0x91] sm:$0xff]
        %v483 = vld [vmem:[%s299 + $0x99] sm:$0xff]
        %v484 = vld [vmem:[%s299 + $0xa9] sm:$0xff]
        %v485 = vld [vmem:[%s299 + $0xb1] sm:$0xff]
        %v486 = vld [vmem:[%s299 + $0xc1] sm:$0xff]
        %v487 = vld [vmem:[%s299 + $0xc9] sm:$0xff]
        %v488 = vld [vmem:[%s299 + $0xd9] sm:$0xff]
        %v489 = vld [vmem:[%s299 + $0xe1] sm:$0xff]
        %v490 = vld [vmem:[%s299 + $0xf1] sm:$0xff]
        %v491 = vld [vmem:[%s299 + $0xf9] sm:$0xff]
        %v492 = vld [vmem:[%s299 + $0x109] sm:$0xff]
        %v493 = vld [vmem:[%s299 + $0x111] sm:$0xff]
        %v494 = vld [vmem:[%s299 + $0x121] sm:$0xff]
        %v495 = vld [vmem:[%s299 + $0x129] sm:$0xff]
        %v496 = vld [vmem:[%s299 + $0x139] sm:$0xff]
        %v497 = vld [vmem:[%s299 + $0x141] sm:$0xff]
        %v498 = vld [vmem:[%s299 + $0x151] sm:$0xff]
        %v499 = vld [vmem:[%s299 + $0x159] sm:$0xff]
        %v500 = vld [vmem:[%s299 + $0x169] sm:$0xff]
        %v501 = vld [vmem:[%s299 + $0x171] sm:$0xff]
        %v502 = vld [vmem:[%s299 + $0x2] sm:$0xff]
        %v503 = vld [vmem:[%s299 + $0xa] sm:$0xff]
        %v504 = vld [vmem:[%s299 + $0x1a] sm:$0xff]
        %v505 = vld [vmem:[%s299 + $0x22] sm:$0xff]
        %v506 = vld [vmem:[%s299 + $0x32] sm:$0xff]
        %v507 = vld [vmem:[%s299 + $0x3a] sm:$0xff]
        %v508 = vld [vmem:[%s299 + $0x4a] sm:$0xff]
        %v509 = vld [vmem:[%s299 + $0x52] sm:$0xff]
        %v510 = vld [vmem:[%s299 + $0x62] sm:$0xff]
        %v511 = vld [vmem:[%s299 + $0x6a] sm:$0xff]
        %v512 = vld [vmem:[%s299 + $0x7a] sm:$0xff]
        %v513 = vld [vmem:[%s299 + $0x82] sm:$0xff]
        %v514 = vld [vmem:[%s299 + $0x92] sm:$0xff]
        %v515 = vld [vmem:[%s299 + $0x9a] sm:$0xff]
        %v516 = vld [vmem:[%s299 + $0xaa] sm:$0xff]
        %v517 = vld [vmem:[%s299 + $0xb2] sm:$0xff]
        %v518 = vld [vmem:[%s299 + $0xc2] sm:$0xff]
        %v519 = vld [vmem:[%s299 + $0xca] sm:$0xff]
        %v520 = vld [vmem:[%s299 + $0xda] sm:$0xff]
        %v521 = vld [vmem:[%s299 + $0xe2] sm:$0xff]
        %v522 = vld [vmem:[%s299 + $0xf2] sm:$0xff]
        %v523 = vld [vmem:[%s299 + $0xfa] sm:$0xff]
        %v524 = vld [vmem:[%s299 + $0x10a] sm:$0xff]
        %v525 = vld [vmem:[%s299 + $0x112] sm:$0xff]
        %v526 = vld [vmem:[%s299 + $0x122] sm:$0xff]
        %v527 = vld [vmem:[%s299 + $0x12a] sm:$0xff]
        %v528 = vld [vmem:[%s299 + $0x13a] sm:$0xff]
        %v529 = vld [vmem:[%s299 + $0x142] sm:$0xff]
        %v530 = vld [vmem:[%s299 + $0x152] sm:$0xff]
        %v531 = vld [vmem:[%s299 + $0x15a] sm:$0xff]
        %v532 = vld [vmem:[%s299 + $0x16a] sm:$0xff]
        %v533 = vld [vmem:[%s299 + $0x172] sm:$0xff]
        %s534 = scalar_lea.vmem %s299, 24
        %v535 = vld [vmem:[%s534] sm:$0xff]
        %v536 = vld [vmem:[%s534 + $0x8] sm:$0xff]
        %v537 = vld [vmem:[%s534 + $0x18] sm:$0xff]
        %v538 = vld [vmem:[%s534 + $0x20] sm:$0xff]
        %v539 = vld [vmem:[%s534 + $0x30] sm:$0xff]
        %v540 = vld [vmem:[%s534 + $0x38] sm:$0xff]
        %v541 = vld [vmem:[%s534 + $0x48] sm:$0xff]
        %v542 = vld [vmem:[%s534 + $0x50] sm:$0xff]
        %v543 = vld [vmem:[%s534 + $0x60] sm:$0xff]
        %v544 = vld [vmem:[%s534 + $0x68] sm:$0xff]
        %v545 = vld [vmem:[%s534 + $0x78] sm:$0xff]
        %v546 = vld [vmem:[%s534 + $0x80] sm:$0xff]
        %v547 = vld [vmem:[%s534 + $0x90] sm:$0xff]
        %v548 = vld [vmem:[%s534 + $0x98] sm:$0xff]
        %v549 = vld [vmem:[%s534 + $0xa8] sm:$0xff]
        %v550 = vld [vmem:[%s534 + $0xb0] sm:$0xff]
        %v551 = vld [vmem:[%s534 + $0xc0] sm:$0xff]
        %v552 = vld [vmem:[%s534 + $0xc8] sm:$0xff]
        %v553 = vld [vmem:[%s534 + $0xd8] sm:$0xff]
        %v554 = vld [vmem:[%s534 + $0xe0] sm:$0xff]
        %v555 = vld [vmem:[%s534 + $0xf0] sm:$0xff]
        %v556 = vld [vmem:[%s534 + $0xf8] sm:$0xff]
        %v557 = vld [vmem:[%s534 + $0x108] sm:$0xff]
        %v558 = vld [vmem:[%s534 + $0x110] sm:$0xff]
        %v559 = vld [vmem:[%s534 + $0x120] sm:$0xff]
        %v560 = vld [vmem:[%s534 + $0x128] sm:$0xff]
        %v561 = vld [vmem:[%s534 + $0x138] sm:$0xff]
        %v562 = vld [vmem:[%s534 + $0x140] sm:$0xff]
        %v563 = vld [vmem:[%s534 + $0x150] sm:$0xff]
        %v564 = vld [vmem:[%s534 + $0x158] sm:$0xff]
        %v565 = vld [vmem:[%s534 + $0x168] sm:$0xff]
        %v566 = vld [vmem:[%s534 + $0x170] sm:$0xff]
        %v567 = vld [vmem:[%s534 + $0x1] sm:$0xff]
        %v568 = vld [vmem:[%s534 + $0x9] sm:$0xff]
        %v569 = vld [vmem:[%s534 + $0x19] sm:$0xff]
        %v570 = vld [vmem:[%s534 + $0x21] sm:$0xff]
        %v571 = vld [vmem:[%s534 + $0x31] sm:$0xff]
        %v572 = vld [vmem:[%s534 + $0x39] sm:$0xff]
        %v573 = vld [vmem:[%s534 + $0x49] sm:$0xff]
        %v574 = vld [vmem:[%s534 + $0x51] sm:$0xff]
        %v575 = vld [vmem:[%s534 + $0x61] sm:$0xff]
        %v576 = vld [vmem:[%s534 + $0x69] sm:$0xff]
        %v577 = vld [vmem:[%s534 + $0x79] sm:$0xff]
        %v578 = vld [vmem:[%s534 + $0x81] sm:$0xff]
        %v579 = vld [vmem:[%s534 + $0x91] sm:$0xff]
        %v580 = vld [vmem:[%s534 + $0x99] sm:$0xff]
        %v581 = vld [vmem:[%s534 + $0xa9] sm:$0xff]
        %v582 = vld [vmem:[%s534 + $0xb1] sm:$0xff]
        %v583 = vld [vmem:[%s534 + $0xc1] sm:$0xff]
        %v584 = vld [vmem:[%s534 + $0xc9] sm:$0xff]
        %v585 = vld [vmem:[%s534 + $0xd9] sm:$0xff]
        %v586 = vld [vmem:[%s534 + $0xe1] sm:$0xff]
        %v587 = vld [vmem:[%s534 + $0xf1] sm:$0xff]
        %v588 = vld [vmem:[%s534 + $0xf9] sm:$0xff]
        %v589 = vld [vmem:[%s534 + $0x109] sm:$0xff]
        %v590 = vld [vmem:[%s534 + $0x111] sm:$0xff]
        %v591 = vld [vmem:[%s534 + $0x121] sm:$0xff]
        %v592 = vld [vmem:[%s534 + $0x129] sm:$0xff]
        %v593 = vld [vmem:[%s534 + $0x139] sm:$0xff]
        %v594 = vld [vmem:[%s534 + $0x141] sm:$0xff]
        %v595 = vld [vmem:[%s534 + $0x151] sm:$0xff]
        %v596 = vld [vmem:[%s534 + $0x159] sm:$0xff]
        %v597 = vld [vmem:[%s534 + $0x169] sm:$0xff]
        %v598 = vld [vmem:[%s534 + $0x171] sm:$0xff]
        %v599 = vld [vmem:[%s534 + $0x2] sm:$0xff]
        %v600 = vld [vmem:[%s534 + $0xa] sm:$0xff]
        %v601 = vld [vmem:[%s534 + $0x1a] sm:$0xff]
        %v602 = vld [vmem:[%s534 + $0x22] sm:$0xff]
        %v603 = vld [vmem:[%s534 + $0x32] sm:$0xff]
        %v604 = vld [vmem:[%s534 + $0x3a] sm:$0xff]
        %v605 = vld [vmem:[%s534 + $0x4a] sm:$0xff]
        %v606 = vld [vmem:[%s534 + $0x52] sm:$0xff]
        %v607 = vld [vmem:[%s534 + $0x62] sm:$0xff]
        %v608 = vld [vmem:[%s534 + $0x6a] sm:$0xff]
        %v609 = vld [vmem:[%s534 + $0x7a] sm:$0xff]
        %v610 = vld [vmem:[%s534 + $0x82] sm:$0xff]
        %v611 = vld [vmem:[%s534 + $0x92] sm:$0xff]
        %v612 = vld [vmem:[%s534 + $0x9a] sm:$0xff]
        %v613 = vld [vmem:[%s534 + $0xaa] sm:$0xff]
        %v614 = vld [vmem:[%s534 + $0xb2] sm:$0xff]
        %v615 = vld [vmem:[%s534 + $0xc2] sm:$0xff]
        %v616 = vld [vmem:[%s534 + $0xca] sm:$0xff]
        %v617 = vld [vmem:[%s534 + $0xda] sm:$0xff]
        %v618 = vld [vmem:[%s534 + $0xe2] sm:$0xff]
        %v619 = vld [vmem:[%s534 + $0xf2] sm:$0xff]
        %v620 = vld [vmem:[%s534 + $0xfa] sm:$0xff]
        %v621 = vld [vmem:[%s534 + $0x10a] sm:$0xff]
        %v622 = vld [vmem:[%s534 + $0x112] sm:$0xff]
        %v623 = vld [vmem:[%s534 + $0x122] sm:$0xff]
        %v624 = vld [vmem:[%s534 + $0x12a] sm:$0xff]
        %v625 = vld [vmem:[%s534 + $0x13a] sm:$0xff]
        %v626 = vld [vmem:[%s534 + $0x142] sm:$0xff]
        %v627 = vld [vmem:[%s534 + $0x152] sm:$0xff]
        %v628 = vld [vmem:[%s534 + $0x15a] sm:$0xff]
        %v629 = vld [vmem:[%s534 + $0x16a] sm:$0xff]
        %v630 = vld [vmem:[%s534 + $0x172] sm:$0xff]
        %s631 = scalar_lea.vmem %s299, 48
        %v632 = vld [vmem:[%s631] sm:$0xff]
        %v633 = vld [vmem:[%s631 + $0x8] sm:$0xff]
        %v634 = vld [vmem:[%s631 + $0x18] sm:$0xff]
        %v635 = vld [vmem:[%s631 + $0x20] sm:$0xff]
        %v636 = vld [vmem:[%s631 + $0x30] sm:$0xff]
        %v637 = vld [vmem:[%s631 + $0x38] sm:$0xff]
        %v638 = vld [vmem:[%s631 + $0x48] sm:$0xff]
        %v639 = vld [vmem:[%s631 + $0x50] sm:$0xff]
        %v640 = vld [vmem:[%s631 + $0x60] sm:$0xff]
        %v641 = vld [vmem:[%s631 + $0x68] sm:$0xff]
        %v642 = vld [vmem:[%s631 + $0x78] sm:$0xff]
        %v643 = vld [vmem:[%s631 + $0x80] sm:$0xff]
        %v644 = vld [vmem:[%s631 + $0x90] sm:$0xff]
        %v645 = vld [vmem:[%s631 + $0x98] sm:$0xff]
        %v646 = vld [vmem:[%s631 + $0xa8] sm:$0xff]
        %v647 = vld [vmem:[%s631 + $0xb0] sm:$0xff]
        %v648 = vld [vmem:[%s631 + $0xc0] sm:$0xff]
        %v649 = vld [vmem:[%s631 + $0xc8] sm:$0xff]
        %v650 = vld [vmem:[%s631 + $0xd8] sm:$0xff]
        %v651 = vld [vmem:[%s631 + $0xe0] sm:$0xff]
        %v652 = vld [vmem:[%s631 + $0xf0] sm:$0xff]
        %v653 = vld [vmem:[%s631 + $0xf8] sm:$0xff]
        %v654 = vld [vmem:[%s631 + $0x108] sm:$0xff]
        %v655 = vld [vmem:[%s631 + $0x110] sm:$0xff]
        %v656 = vld [vmem:[%s631 + $0x120] sm:$0xff]
        %v657 = vld [vmem:[%s631 + $0x128] sm:$0xff]
        %v658 = vld [vmem:[%s631 + $0x138] sm:$0xff]
        %v659 = vld [vmem:[%s631 + $0x140] sm:$0xff]
        %v660 = vld [vmem:[%s631 + $0x150] sm:$0xff]
        %v661 = vld [vmem:[%s631 + $0x158] sm:$0xff]
        %v662 = vld [vmem:[%s631 + $0x168] sm:$0xff]
        %v663 = vld [vmem:[%s631 + $0x170] sm:$0xff]
        %v664 = vld [vmem:[%s631 + $0x1] sm:$0xff]
        %v665 = vld [vmem:[%s631 + $0x9] sm:$0xff]
        %v666 = vld [vmem:[%s631 + $0x19] sm:$0xff]
        %v667 = vld [vmem:[%s631 + $0x21] sm:$0xff]
        %v668 = vld [vmem:[%s631 + $0x31] sm:$0xff]
        %v669 = vld [vmem:[%s631 + $0x39] sm:$0xff]
        %v670 = vld [vmem:[%s631 + $0x49] sm:$0xff]
        %v671 = vld [vmem:[%s631 + $0x51] sm:$0xff]
        %v672 = vld [vmem:[%s631 + $0x61] sm:$0xff]
        %v673 = vld [vmem:[%s631 + $0x69] sm:$0xff]
        %v674 = vld [vmem:[%s631 + $0x79] sm:$0xff]
        %v675 = vld [vmem:[%s631 + $0x81] sm:$0xff]
        %v676 = vld [vmem:[%s631 + $0x91] sm:$0xff]
        %v677 = vld [vmem:[%s631 + $0x99] sm:$0xff]
        %v678 = vld [vmem:[%s631 + $0xa9] sm:$0xff]
        %v679 = vld [vmem:[%s631 + $0xb1] sm:$0xff]
        %v680 = vld [vmem:[%s631 + $0xc1] sm:$0xff]
        %v681 = vld [vmem:[%s631 + $0xc9] sm:$0xff]
        %v682 = vld [vmem:[%s631 + $0xd9] sm:$0xff]
        %v683 = vld [vmem:[%s631 + $0xe1] sm:$0xff]
        %v684 = vld [vmem:[%s631 + $0xf1] sm:$0xff]
        %v685 = vld [vmem:[%s631 + $0xf9] sm:$0xff]
        %v686 = vld [vmem:[%s631 + $0x109] sm:$0xff]
        %v687 = vld [vmem:[%s631 + $0x111] sm:$0xff]
        %v688 = vld [vmem:[%s631 + $0x121] sm:$0xff]
        %v689 = vld [vmem:[%s631 + $0x129] sm:$0xff]
        %v690 = vld [vmem:[%s631 + $0x139] sm:$0xff]
        %v691 = vld [vmem:[%s631 + $0x141] sm:$0xff]
        %v692 = vld [vmem:[%s631 + $0x151] sm:$0xff]
        %v693 = vld [vmem:[%s631 + $0x159] sm:$0xff]
        %v694 = vld [vmem:[%s631 + $0x169] sm:$0xff]
        %v695 = vld [vmem:[%s631 + $0x171] sm:$0xff]
        %v696 = vld [vmem:[%s631 + $0x2] sm:$0xff]
        %v697 = vld [vmem:[%s631 + $0xa] sm:$0xff]
        %v698 = vld [vmem:[%s631 + $0x1a] sm:$0xff]
        %v699 = vld [vmem:[%s631 + $0x22] sm:$0xff]
        %v700 = vld [vmem:[%s631 + $0x32] sm:$0xff]
        %v701 = vld [vmem:[%s631 + $0x3a] sm:$0xff]
        %v702 = vld [vmem:[%s631 + $0x4a] sm:$0xff]
        %v703 = vld [vmem:[%s631 + $0x52] sm:$0xff]
        %v704 = vld [vmem:[%s631 + $0x62] sm:$0xff]
        %v705 = vld [vmem:[%s631 + $0x6a] sm:$0xff]
        %v706 = vld [vmem:[%s631 + $0x7a] sm:$0xff]
        %v707 = vld [vmem:[%s631 + $0x82] sm:$0xff]
        %v708 = vld [vmem:[%s631 + $0x92] sm:$0xff]
        %v709 = vld [vmem:[%s631 + $0x9a] sm:$0xff]
        %v710 = vld [vmem:[%s631 + $0xaa] sm:$0xff]
        %v711 = vld [vmem:[%s631 + $0xb2] sm:$0xff]
        %v712 = vld [vmem:[%s631 + $0xc2] sm:$0xff]
        %v713 = vld [vmem:[%s631 + $0xca] sm:$0xff]
        %v714 = vld [vmem:[%s631 + $0xda] sm:$0xff]
        %v715 = vld [vmem:[%s631 + $0xe2] sm:$0xff]
        %v716 = vld [vmem:[%s631 + $0xf2] sm:$0xff]
        %v717 = vld [vmem:[%s631 + $0xfa] sm:$0xff]
        %v718 = vld [vmem:[%s631 + $0x10a] sm:$0xff]
        %v719 = vld [vmem:[%s631 + $0x112] sm:$0xff]
        %v720 = vld [vmem:[%s631 + $0x122] sm:$0xff]
        %v721 = vld [vmem:[%s631 + $0x12a] sm:$0xff]
        %v722 = vld [vmem:[%s631 + $0x13a] sm:$0xff]
        %v723 = vld [vmem:[%s631 + $0x142] sm:$0xff]
        %v724 = vld [vmem:[%s631 + $0x152] sm:$0xff]
        %v725 = vld [vmem:[%s631 + $0x15a] sm:$0xff]
        %v726 = vld [vmem:[%s631 + $0x16a] sm:$0xff]
        %v727 = vld [vmem:[%s631 + $0x172] sm:$0xff]
        %760 = vrot.lane.b32.xlu0 %v470, 4
        %v761 = vpop.permute.xlu0 %760
        %762 = vrot.lane.b32.xlu0 %v471, 4
        %v763 = vpop.permute.xlu0 %762
        %764 = vrot.lane.b32.xlu0 %v472, 4
        %v765 = vpop.permute.xlu0 %764
        %766 = vrot.lane.b32.xlu0 %v473, 4
        %v767 = vpop.permute.xlu0 %766
        %768 = vrot.lane.b32.xlu0 %v474, 4
        %v769 = vpop.permute.xlu0 %768
        %770 = vrot.lane.b32.xlu0 %v475, 4
        %v771 = vpop.permute.xlu0 %770
        %772 = vrot.lane.b32.xlu0 %v476, 4
        %v773 = vpop.permute.xlu0 %772
        %774 = vrot.lane.b32.xlu0 %v477, 4
        %v775 = vpop.permute.xlu0 %774
        %776 = vrot.lane.b32.xlu0 %v478, 4
        %v777 = vpop.permute.xlu0 %776
        %778 = vrot.lane.b32.xlu0 %v479, 4
        %v779 = vpop.permute.xlu0 %778
        %780 = vrot.lane.b32.xlu0 %v480, 4
        %v781 = vpop.permute.xlu0 %780
        %782 = vrot.lane.b32.xlu0 %v481, 4
        %v783 = vpop.permute.xlu0 %782
        %784 = vrot.lane.b32.xlu0 %v482, 4
        %v785 = vpop.permute.xlu0 %784
        %786 = vrot.lane.b32.xlu0 %v483, 4
        %v787 = vpop.permute.xlu0 %786
        %788 = vrot.lane.b32.xlu0 %v484, 4
        %v789 = vpop.permute.xlu0 %788
        %790 = vrot.lane.b32.xlu0 %v485, 4
        %v791 = vpop.permute.xlu0 %790
        %792 = vrot.lane.b32.xlu0 %v486, 4
        %v793 = vpop.permute.xlu0 %792
        %794 = vrot.lane.b32.xlu0 %v487, 4
        %v795 = vpop.permute.xlu0 %794
        %796 = vrot.lane.b32.xlu0 %v488, 4
        %v797 = vpop.permute.xlu0 %796
        %798 = vrot.lane.b32.xlu0 %v489, 4
        %v799 = vpop.permute.xlu0 %798
        %800 = vrot.lane.b32.xlu0 %v490, 4
        %v801 = vpop.permute.xlu0 %800
        %802 = vrot.lane.b32.xlu0 %v491, 4
        %v803 = vpop.permute.xlu0 %802
        %804 = vrot.lane.b32.xlu0 %v492, 4
        %v805 = vpop.permute.xlu0 %804
        %806 = vrot.lane.b32.xlu0 %v493, 4
        %v807 = vpop.permute.xlu0 %806
        %808 = vrot.lane.b32.xlu0 %v494, 4
        %v809 = vpop.permute.xlu0 %808
        %810 = vrot.lane.b32.xlu0 %v495, 4
        %v811 = vpop.permute.xlu0 %810
        %812 = vrot.lane.b32.xlu0 %v496, 4
        %v813 = vpop.permute.xlu0 %812
        %814 = vrot.lane.b32.xlu0 %v497, 4
        %v815 = vpop.permute.xlu0 %814
        %816 = vrot.lane.b32.xlu0 %v498, 4
        %v817 = vpop.permute.xlu0 %816
        %818 = vrot.lane.b32.xlu0 %v499, 4
        %v819 = vpop.permute.xlu0 %818
        %820 = vrot.lane.b32.xlu0 %v500, 4
        %v821 = vpop.permute.xlu0 %820
        %822 = vrot.lane.b32.xlu0 %v501, 4
        %v823 = vpop.permute.xlu0 %822
        %888 = vrot.lane.b32.xlu0 %v502, 8
        %v889 = vpop.permute.xlu0 %888
        %890 = vrot.lane.b32.xlu0 %v503, 8
        %v891 = vpop.permute.xlu0 %890
        %892 = vrot.lane.b32.xlu0 %v504, 8
        %v893 = vpop.permute.xlu0 %892
        %894 = vrot.lane.b32.xlu0 %v505, 8
        %v895 = vpop.permute.xlu0 %894
        %896 = vrot.lane.b32.xlu0 %v506, 8
        %v897 = vpop.permute.xlu0 %896
        %898 = vrot.lane.b32.xlu0 %v507, 8
        %v899 = vpop.permute.xlu0 %898
        %900 = vrot.lane.b32.xlu0 %v508, 8
        %v901 = vpop.permute.xlu0 %900
        %902 = vrot.lane.b32.xlu0 %v509, 8
        %v903 = vpop.permute.xlu0 %902
        %904 = vrot.lane.b32.xlu0 %v510, 8
        %v905 = vpop.permute.xlu0 %904
        %906 = vrot.lane.b32.xlu0 %v511, 8
        %v907 = vpop.permute.xlu0 %906
        %908 = vrot.lane.b32.xlu0 %v512, 8
        %v909 = vpop.permute.xlu0 %908
        %910 = vrot.lane.b32.xlu0 %v513, 8
        %v911 = vpop.permute.xlu0 %910
        %912 = vrot.lane.b32.xlu0 %v514, 8
        %v913 = vpop.permute.xlu0 %912
        %914 = vrot.lane.b32.xlu0 %v515, 8
        %v915 = vpop.permute.xlu0 %914
        %916 = vrot.lane.b32.xlu0 %v516, 8
        %v917 = vpop.permute.xlu0 %916
        %918 = vrot.lane.b32.xlu0 %v517, 8
        %v919 = vpop.permute.xlu0 %918
        %920 = vrot.lane.b32.xlu0 %v518, 8
        %v921 = vpop.permute.xlu0 %920
        %922 = vrot.lane.b32.xlu0 %v519, 8
        %v923 = vpop.permute.xlu0 %922
        %924 = vrot.lane.b32.xlu0 %v520, 8
        %v925 = vpop.permute.xlu0 %924
        %926 = vrot.lane.b32.xlu0 %v521, 8
        %v927 = vpop.permute.xlu0 %926
        %928 = vrot.lane.b32.xlu0 %v522, 8
        %v929 = vpop.permute.xlu0 %928
        %930 = vrot.lane.b32.xlu0 %v523, 8
        %v931 = vpop.permute.xlu0 %930
        %932 = vrot.lane.b32.xlu0 %v524, 8
        %v933 = vpop.permute.xlu0 %932
        %934 = vrot.lane.b32.xlu0 %v525, 8
        %v935 = vpop.permute.xlu0 %934
        %936 = vrot.lane.b32.xlu0 %v526, 8
        %v937 = vpop.permute.xlu0 %936
        %938 = vrot.lane.b32.xlu0 %v527, 8
        %v939 = vpop.permute.xlu0 %938
        %940 = vrot.lane.b32.xlu0 %v528, 8
        %v941 = vpop.permute.xlu0 %940
        %942 = vrot.lane.b32.xlu0 %v529, 8
        %v943 = vpop.permute.xlu0 %942
        %944 = vrot.lane.b32.xlu0 %v530, 8
        %v945 = vpop.permute.xlu0 %944
        %946 = vrot.lane.b32.xlu0 %v531, 8
        %v947 = vpop.permute.xlu0 %946
        %948 = vrot.lane.b32.xlu0 %v532, 8
        %v949 = vpop.permute.xlu0 %948
        %950 = vrot.lane.b32.xlu0 %v533, 8
        %v951 = vpop.permute.xlu0 %950
        %1016 = vrot.lane.b32.xlu0 %v535, 12
        %v1017 = vpop.permute.xlu0 %1016
        %1018 = vrot.lane.b32.xlu0 %v536, 12
        %v1019 = vpop.permute.xlu0 %1018
        %1020 = vrot.lane.b32.xlu0 %v537, 12
        %v1021 = vpop.permute.xlu0 %1020
        %1022 = vrot.lane.b32.xlu0 %v538, 12
        %v1023 = vpop.permute.xlu0 %1022
        %1024 = vrot.lane.b32.xlu0 %v539, 12
        %v1025 = vpop.permute.xlu0 %1024
        %1026 = vrot.lane.b32.xlu0 %v540, 12
        %v1027 = vpop.permute.xlu0 %1026
        %1028 = vrot.lane.b32.xlu0 %v541, 12
        %v1029 = vpop.permute.xlu0 %1028
        %1030 = vrot.lane.b32.xlu0 %v542, 12
        %v1031 = vpop.permute.xlu0 %1030
        %1032 = vrot.lane.b32.xlu0 %v543, 12
        %v1033 = vpop.permute.xlu0 %1032
        %1034 = vrot.lane.b32.xlu0 %v544, 12
        %v1035 = vpop.permute.xlu0 %1034
        %1036 = vrot.lane.b32.xlu0 %v545, 12
        %v1037 = vpop.permute.xlu0 %1036
        %1038 = vrot.lane.b32.xlu0 %v546, 12
        %v1039 = vpop.permute.xlu0 %1038
        %1040 = vrot.lane.b32.xlu0 %v547, 12
        %v1041 = vpop.permute.xlu0 %1040
        %1042 = vrot.lane.b32.xlu0 %v548, 12
        %v1043 = vpop.permute.xlu0 %1042
        %1044 = vrot.lane.b32.xlu0 %v549, 12
        %v1045 = vpop.permute.xlu0 %1044
        %1046 = vrot.lane.b32.xlu0 %v550, 12
        %v1047 = vpop.permute.xlu0 %1046
        %1048 = vrot.lane.b32.xlu0 %v551, 12
        %v1049 = vpop.permute.xlu0 %1048
        %1050 = vrot.lane.b32.xlu0 %v552, 12
        %v1051 = vpop.permute.xlu0 %1050
        %1052 = vrot.lane.b32.xlu0 %v553, 12
        %v1053 = vpop.permute.xlu0 %1052
        %1054 = vrot.lane.b32.xlu0 %v554, 12
        %v1055 = vpop.permute.xlu0 %1054
        %1056 = vrot.lane.b32.xlu0 %v555, 12
        %v1057 = vpop.permute.xlu0 %1056
        %1058 = vrot.lane.b32.xlu0 %v556, 12
        %v1059 = vpop.permute.xlu0 %1058
        %1060 = vrot.lane.b32.xlu0 %v557, 12
        %v1061 = vpop.permute.xlu0 %1060
        %1062 = vrot.lane.b32.xlu0 %v558, 12
        %v1063 = vpop.permute.xlu0 %1062
        %1064 = vrot.lane.b32.xlu0 %v559, 12
        %v1065 = vpop.permute.xlu0 %1064
        %1066 = vrot.lane.b32.xlu0 %v560, 12
        %v1067 = vpop.permute.xlu0 %1066
        %1068 = vrot.lane.b32.xlu0 %v561, 12
        %v1069 = vpop.permute.xlu0 %1068
        %1070 = vrot.lane.b32.xlu0 %v562, 12
        %v1071 = vpop.permute.xlu0 %1070
        %1072 = vrot.lane.b32.xlu0 %v563, 12
        %v1073 = vpop.permute.xlu0 %1072
        %1074 = vrot.lane.b32.xlu0 %v564, 12
        %v1075 = vpop.permute.xlu0 %1074
        %1076 = vrot.lane.b32.xlu0 %v565, 12
        %v1077 = vpop.permute.xlu0 %1076
        %1078 = vrot.lane.b32.xlu0 %v566, 12
        %v1079 = vpop.permute.xlu0 %1078
        %1144 = vrot.lane.b32.xlu0 %v567, 16
        %v1145 = vpop.permute.xlu0 %1144
        %1146 = vrot.lane.b32.xlu0 %v568, 16
        %v1147 = vpop.permute.xlu0 %1146
        %1148 = vrot.lane.b32.xlu0 %v569, 16
        %v1149 = vpop.permute.xlu0 %1148
        %1150 = vrot.lane.b32.xlu0 %v570, 16
        %v1151 = vpop.permute.xlu0 %1150
        %1152 = vrot.lane.b32.xlu0 %v571, 16
        %v1153 = vpop.permute.xlu0 %1152
        %1154 = vrot.lane.b32.xlu0 %v572, 16
        %v1155 = vpop.permute.xlu0 %1154
        %1156 = vrot.lane.b32.xlu0 %v573, 16
        %v1157 = vpop.permute.xlu0 %1156
        %1158 = vrot.lane.b32.xlu0 %v574, 16
        %v1159 = vpop.permute.xlu0 %1158
        %1160 = vrot.lane.b32.xlu0 %v575, 16
        %v1161 = vpop.permute.xlu0 %1160
        %1162 = vrot.lane.b32.xlu0 %v576, 16
        %v1163 = vpop.permute.xlu0 %1162
        %1164 = vrot.lane.b32.xlu0 %v577, 16
        %v1165 = vpop.permute.xlu0 %1164
        %1166 = vrot.lane.b32.xlu0 %v578, 16
        %v1167 = vpop.permute.xlu0 %1166
        %1168 = vrot.lane.b32.xlu0 %v579, 16
        %v1169 = vpop.permute.xlu0 %1168
        %1170 = vrot.lane.b32.xlu0 %v580, 16
        %v1171 = vpop.permute.xlu0 %1170
        %1172 = vrot.lane.b32.xlu0 %v581, 16
        %v1173 = vpop.permute.xlu0 %1172
        %1174 = vrot.lane.b32.xlu0 %v582, 16
        %v1175 = vpop.permute.xlu0 %1174
        %1176 = vrot.lane.b32.xlu0 %v583, 16
        %v1177 = vpop.permute.xlu0 %1176
        %1178 = vrot.lane.b32.xlu0 %v584, 16
        %v1179 = vpop.permute.xlu0 %1178
        %1180 = vrot.lane.b32.xlu0 %v585, 16
        %v1181 = vpop.permute.xlu0 %1180
        %1182 = vrot.lane.b32.xlu0 %v586, 16
        %v1183 = vpop.permute.xlu0 %1182
        %1184 = vrot.lane.b32.xlu0 %v587, 16
        %v1185 = vpop.permute.xlu0 %1184
        %1186 = vrot.lane.b32.xlu0 %v588, 16
        %v1187 = vpop.permute.xlu0 %1186
        %1188 = vrot.lane.b32.xlu0 %v589, 16
        %v1189 = vpop.permute.xlu0 %1188
        %1190 = vrot.lane.b32.xlu0 %v590, 16
        %v1191 = vpop.permute.xlu0 %1190
        %1192 = vrot.lane.b32.xlu0 %v591, 16
        %v1193 = vpop.permute.xlu0 %1192
        %1194 = vrot.lane.b32.xlu0 %v592, 16
        %v1195 = vpop.permute.xlu0 %1194
        %1196 = vrot.lane.b32.xlu0 %v593, 16
        %v1197 = vpop.permute.xlu0 %1196
        %1198 = vrot.lane.b32.xlu0 %v594, 16
        %v1199 = vpop.permute.xlu0 %1198
        %1200 = vrot.lane.b32.xlu0 %v595, 16
        %v1201 = vpop.permute.xlu0 %1200
        %1202 = vrot.lane.b32.xlu0 %v596, 16
        %v1203 = vpop.permute.xlu0 %1202
        %1204 = vrot.lane.b32.xlu0 %v597, 16
        %v1205 = vpop.permute.xlu0 %1204
        %1206 = vrot.lane.b32.xlu0 %v598, 16
        %v1207 = vpop.permute.xlu0 %1206
        %1272 = vrot.lane.b32.xlu0 %v599, 20
        %v1273 = vpop.permute.xlu0 %1272
        %1274 = vrot.lane.b32.xlu0 %v600, 20
        %v1275 = vpop.permute.xlu0 %1274
        %1276 = vrot.lane.b32.xlu0 %v601, 20
        %v1277 = vpop.permute.xlu0 %1276
        %1278 = vrot.lane.b32.xlu0 %v602, 20
        %v1279 = vpop.permute.xlu0 %1278
        %1280 = vrot.lane.b32.xlu0 %v603, 20
        %v1281 = vpop.permute.xlu0 %1280
        %1282 = vrot.lane.b32.xlu0 %v604, 20
        %v1283 = vpop.permute.xlu0 %1282
        %1284 = vrot.lane.b32.xlu0 %v605, 20
        %v1285 = vpop.permute.xlu0 %1284
        %1286 = vrot.lane.b32.xlu0 %v606, 20
        %v1287 = vpop.permute.xlu0 %1286
        %1288 = vrot.lane.b32.xlu0 %v607, 20
        %v1289 = vpop.permute.xlu0 %1288
        %1290 = vrot.lane.b32.xlu0 %v608, 20
        %v1291 = vpop.permute.xlu0 %1290
        %1292 = vrot.lane.b32.xlu0 %v609, 20
        %v1293 = vpop.permute.xlu0 %1292
        %1294 = vrot.lane.b32.xlu0 %v610, 20
        %v1295 = vpop.permute.xlu0 %1294
        %1296 = vrot.lane.b32.xlu0 %v611, 20
        %v1297 = vpop.permute.xlu0 %1296
        %1298 = vrot.lane.b32.xlu0 %v612, 20
        %v1299 = vpop.permute.xlu0 %1298
        %1300 = vrot.lane.b32.xlu0 %v613, 20
        %v1301 = vpop.permute.xlu0 %1300
        %1302 = vrot.lane.b32.xlu0 %v614, 20
        %v1303 = vpop.permute.xlu0 %1302
        %1304 = vrot.lane.b32.xlu0 %v615, 20
        %v1305 = vpop.permute.xlu0 %1304
        %1306 = vrot.lane.b32.xlu0 %v616, 20
        %v1307 = vpop.permute.xlu0 %1306
        %1308 = vrot.lane.b32.xlu0 %v617, 20
        %v1309 = vpop.permute.xlu0 %1308
        %1310 = vrot.lane.b32.xlu0 %v618, 20
        %v1311 = vpop.permute.xlu0 %1310
        %1312 = vrot.lane.b32.xlu0 %v619, 20
        %v1313 = vpop.permute.xlu0 %1312
        %1314 = vrot.lane.b32.xlu0 %v620, 20
        %v1315 = vpop.permute.xlu0 %1314
        %1316 = vrot.lane.b32.xlu0 %v621, 20
        %v1317 = vpop.permute.xlu0 %1316
        %1318 = vrot.lane.b32.xlu0 %v622, 20
        %v1319 = vpop.permute.xlu0 %1318
        %1320 = vrot.lane.b32.xlu0 %v623, 20
        %v1321 = vpop.permute.xlu0 %1320
        %1322 = vrot.lane.b32.xlu0 %v624, 20
        %v1323 = vpop.permute.xlu0 %1322
        %1324 = vrot.lane.b32.xlu0 %v625, 20
        %v1325 = vpop.permute.xlu0 %1324
        %1326 = vrot.lane.b32.xlu0 %v626, 20
        %v1327 = vpop.permute.xlu0 %1326
        %1328 = vrot.lane.b32.xlu0 %v627, 20
        %v1329 = vpop.permute.xlu0 %1328
        %1330 = vrot.lane.b32.xlu0 %v628, 20
        %v1331 = vpop.permute.xlu0 %1330
        %1332 = vrot.lane.b32.xlu0 %v629, 20
        %v1333 = vpop.permute.xlu0 %1332
        %1334 = vrot.lane.b32.xlu0 %v630, 20
        %v1335 = vpop.permute.xlu0 %1334
        %1400 = vrot.lane.b32.xlu0 %v632, 24
        %v1401 = vpop.permute.xlu0 %1400
        %1402 = vrot.lane.b32.xlu0 %v633, 24
        %v1403 = vpop.permute.xlu0 %1402
        %1404 = vrot.lane.b32.xlu0 %v634, 24
        %v1405 = vpop.permute.xlu0 %1404
        %1406 = vrot.lane.b32.xlu0 %v635, 24
        %v1407 = vpop.permute.xlu0 %1406
        %1408 = vrot.lane.b32.xlu0 %v636, 24
        %v1409 = vpop.permute.xlu0 %1408
        %1410 = vrot.lane.b32.xlu0 %v637, 24
        %v1411 = vpop.permute.xlu0 %1410
        %1412 = vrot.lane.b32.xlu0 %v638, 24
        %v1413 = vpop.permute.xlu0 %1412
        %1414 = vrot.lane.b32.xlu0 %v639, 24
        %v1415 = vpop.permute.xlu0 %1414
        %1416 = vrot.lane.b32.xlu0 %v640, 24
        %v1417 = vpop.permute.xlu0 %1416
        %1418 = vrot.lane.b32.xlu0 %v641, 24
        %v1419 = vpop.permute.xlu0 %1418
        %1420 = vrot.lane.b32.xlu0 %v642, 24
        %v1421 = vpop.permute.xlu0 %1420
        %1422 = vrot.lane.b32.xlu0 %v643, 24
        %v1423 = vpop.permute.xlu0 %1422
        %1424 = vrot.lane.b32.xlu0 %v644, 24
        %v1425 = vpop.permute.xlu0 %1424
        %1426 = vrot.lane.b32.xlu0 %v645, 24
        %v1427 = vpop.permute.xlu0 %1426
        %1428 = vrot.lane.b32.xlu0 %v646, 24
        %v1429 = vpop.permute.xlu0 %1428
        %1430 = vrot.lane.b32.xlu0 %v647, 24
        %v1431 = vpop.permute.xlu0 %1430
        %1432 = vrot.lane.b32.xlu0 %v648, 24
        %v1433 = vpop.permute.xlu0 %1432
        %1434 = vrot.lane.b32.xlu0 %v649, 24
        %v1435 = vpop.permute.xlu0 %1434
        %1436 = vrot.lane.b32.xlu0 %v650, 24
        %v1437 = vpop.permute.xlu0 %1436
        %1438 = vrot.lane.b32.xlu0 %v651, 24
        %v1439 = vpop.permute.xlu0 %1438
        %1440 = vrot.lane.b32.xlu0 %v652, 24
        %v1441 = vpop.permute.xlu0 %1440
        %1442 = vrot.lane.b32.xlu0 %v653, 24
        %v1443 = vpop.permute.xlu0 %1442
        %1444 = vrot.lane.b32.xlu0 %v654, 24
        %v1445 = vpop.permute.xlu0 %1444
        %1446 = vrot.lane.b32.xlu0 %v655, 24
        %v1447 = vpop.permute.xlu0 %1446
        %1448 = vrot.lane.b32.xlu0 %v656, 24
        %v1449 = vpop.permute.xlu0 %1448
        %1450 = vrot.lane.b32.xlu0 %v657, 24
        %v1451 = vpop.permute.xlu0 %1450
        %1452 = vrot.lane.b32.xlu0 %v658, 24
        %v1453 = vpop.permute.xlu0 %1452
        %1454 = vrot.lane.b32.xlu0 %v659, 24
        %v1455 = vpop.permute.xlu0 %1454
        %1456 = vrot.lane.b32.xlu0 %v660, 24
        %v1457 = vpop.permute.xlu0 %1456
        %1458 = vrot.lane.b32.xlu0 %v661, 24
        %v1459 = vpop.permute.xlu0 %1458
        %1460 = vrot.lane.b32.xlu0 %v662, 24
        %v1461 = vpop.permute.xlu0 %1460
        %1462 = vrot.lane.b32.xlu0 %v663, 24
        %v1463 = vpop.permute.xlu0 %1462
        %1528 = vrot.lane.b32.xlu0 %v664, 28
        %v1529 = vpop.permute.xlu0 %1528
        %1530 = vrot.lane.b32.xlu0 %v665, 28
        %v1531 = vpop.permute.xlu0 %1530
        %1532 = vrot.lane.b32.xlu0 %v666, 28
        %v1533 = vpop.permute.xlu0 %1532
        %1534 = vrot.lane.b32.xlu0 %v667, 28
        %v1535 = vpop.permute.xlu0 %1534
        %1536 = vrot.lane.b32.xlu0 %v668, 28
        %v1537 = vpop.permute.xlu0 %1536
        %1538 = vrot.lane.b32.xlu0 %v669, 28
        %v1539 = vpop.permute.xlu0 %1538
        %1540 = vrot.lane.b32.xlu0 %v670, 28
        %v1541 = vpop.permute.xlu0 %1540
        %1542 = vrot.lane.b32.xlu0 %v671, 28
        %v1543 = vpop.permute.xlu0 %1542
        %1544 = vrot.lane.b32.xlu0 %v672, 28
        %v1545 = vpop.permute.xlu0 %1544
        %1546 = vrot.lane.b32.xlu0 %v673, 28
        %v1547 = vpop.permute.xlu0 %1546
        %1548 = vrot.lane.b32.xlu0 %v674, 28
        %v1549 = vpop.permute.xlu0 %1548
        %1550 = vrot.lane.b32.xlu0 %v675, 28
        %v1551 = vpop.permute.xlu0 %1550
        %1552 = vrot.lane.b32.xlu0 %v676, 28
        %v1553 = vpop.permute.xlu0 %1552
        %1554 = vrot.lane.b32.xlu0 %v677, 28
        %v1555 = vpop.permute.xlu0 %1554
        %1556 = vrot.lane.b32.xlu0 %v678, 28
        %v1557 = vpop.permute.xlu0 %1556
        %1558 = vrot.lane.b32.xlu0 %v679, 28
        %v1559 = vpop.permute.xlu0 %1558
        %1560 = vrot.lane.b32.xlu0 %v680, 28
        %v1561 = vpop.permute.xlu0 %1560
        %1562 = vrot.lane.b32.xlu0 %v681, 28
        %v1563 = vpop.permute.xlu0 %1562
        %1564 = vrot.lane.b32.xlu0 %v682, 28
        %v1565 = vpop.permute.xlu0 %1564
        %1566 = vrot.lane.b32.xlu0 %v683, 28
        %v1567 = vpop.permute.xlu0 %1566
        %1568 = vrot.lane.b32.xlu0 %v684, 28
        %v1569 = vpop.permute.xlu0 %1568
        %1570 = vrot.lane.b32.xlu0 %v685, 28
        %v1571 = vpop.permute.xlu0 %1570
        %1572 = vrot.lane.b32.xlu0 %v686, 28
        %v1573 = vpop.permute.xlu0 %1572
        %1574 = vrot.lane.b32.xlu0 %v687, 28
        %v1575 = vpop.permute.xlu0 %1574
        %1576 = vrot.lane.b32.xlu0 %v688, 28
        %v1577 = vpop.permute.xlu0 %1576
        %1578 = vrot.lane.b32.xlu0 %v689, 28
        %v1579 = vpop.permute.xlu0 %1578
        %1580 = vrot.lane.b32.xlu0 %v690, 28
        %v1581 = vpop.permute.xlu0 %1580
        %1582 = vrot.lane.b32.xlu0 %v691, 28
        %v1583 = vpop.permute.xlu0 %1582
        %1584 = vrot.lane.b32.xlu0 %v692, 28
        %v1585 = vpop.permute.xlu0 %1584
        %1586 = vrot.lane.b32.xlu0 %v693, 28
        %v1587 = vpop.permute.xlu0 %1586
        %1588 = vrot.lane.b32.xlu0 %v694, 28
        %v1589 = vpop.permute.xlu0 %1588
        %1590 = vrot.lane.b32.xlu0 %v695, 28
        %v1591 = vpop.permute.xlu0 %1590
        %1656 = vrot.lane.b32.xlu0 %v696, 32
        %v1657 = vpop.permute.xlu0 %1656
        %1658 = vrot.lane.b32.xlu0 %v697, 32
        %v1659 = vpop.permute.xlu0 %1658
        %1660 = vrot.lane.b32.xlu0 %v698, 32
        %v1661 = vpop.permute.xlu0 %1660
        %1662 = vrot.lane.b32.xlu0 %v699, 32
        %v1663 = vpop.permute.xlu0 %1662
        %1664 = vrot.lane.b32.xlu0 %v700, 32
        %v1665 = vpop.permute.xlu0 %1664
        %1666 = vrot.lane.b32.xlu0 %v701, 32
        %v1667 = vpop.permute.xlu0 %1666
        %1668 = vrot.lane.b32.xlu0 %v702, 32
        %v1669 = vpop.permute.xlu0 %1668
        %1670 = vrot.lane.b32.xlu0 %v703, 32
        %v1671 = vpop.permute.xlu0 %1670
        %1672 = vrot.lane.b32.xlu0 %v704, 32
        %v1673 = vpop.permute.xlu0 %1672
        %1674 = vrot.lane.b32.xlu0 %v705, 32
        %v1675 = vpop.permute.xlu0 %1674
        %1676 = vrot.lane.b32.xlu0 %v706, 32
        %v1677 = vpop.permute.xlu0 %1676
        %1678 = vrot.lane.b32.xlu0 %v707, 32
        %v1679 = vpop.permute.xlu0 %1678
        %1680 = vrot.lane.b32.xlu0 %v708, 32
        %v1681 = vpop.permute.xlu0 %1680
        %1682 = vrot.lane.b32.xlu0 %v709, 32
        %v1683 = vpop.permute.xlu0 %1682
        %1684 = vrot.lane.b32.xlu0 %v710, 32
        %v1685 = vpop.permute.xlu0 %1684
        %1686 = vrot.lane.b32.xlu0 %v711, 32
        %v1687 = vpop.permute.xlu0 %1686
        %1688 = vrot.lane.b32.xlu0 %v712, 32
        %v1689 = vpop.permute.xlu0 %1688
        %1690 = vrot.lane.b32.xlu0 %v713, 32
        %v1691 = vpop.permute.xlu0 %1690
        %1692 = vrot.lane.b32.xlu0 %v714, 32
        %v1693 = vpop.permute.xlu0 %1692
        %1694 = vrot.lane.b32.xlu0 %v715, 32
        %v1695 = vpop.permute.xlu0 %1694
        %1696 = vrot.lane.b32.xlu0 %v716, 32
        %v1697 = vpop.permute.xlu0 %1696
        %1698 = vrot.lane.b32.xlu0 %v717, 32
        %v1699 = vpop.permute.xlu0 %1698
        %1700 = vrot.lane.b32.xlu0 %v718, 32
        %v1701 = vpop.permute.xlu0 %1700
        %1702 = vrot.lane.b32.xlu0 %v719, 32
        %v1703 = vpop.permute.xlu0 %1702
        %1704 = vrot.lane.b32.xlu0 %v720, 32
        %v1705 = vpop.permute.xlu0 %1704
        %1706 = vrot.lane.b32.xlu0 %v721, 32
        %v1707 = vpop.permute.xlu0 %1706
        %1708 = vrot.lane.b32.xlu0 %v722, 32
        %v1709 = vpop.permute.xlu0 %1708
        %1710 = vrot.lane.b32.xlu0 %v723, 32
        %v1711 = vpop.permute.xlu0 %1710
        %1712 = vrot.lane.b32.xlu0 %v724, 32
        %v1713 = vpop.permute.xlu0 %1712
        %1714 = vrot.lane.b32.xlu0 %v725, 32
        %v1715 = vpop.permute.xlu0 %1714
        %1716 = vrot.lane.b32.xlu0 %v726, 32
        %v1717 = vpop.permute.xlu0 %1716
        %1718 = vrot.lane.b32.xlu0 %v727, 32
        %v1719 = vpop.permute.xlu0 %1718
        %vm1752 = vcmask 31744
        %v1753 = vsel %vm1752, %v438, %v761
        %v1754 = vsel %vm1752, %v439, %v763
        %v1755 = vsel %vm1752, %v440, %v765
        %v1756 = vsel %vm1752, %v441, %v767
        %v1757 = vsel %vm1752, %v442, %v769
        %v1758 = vsel %vm1752, %v443, %v771
        %v1759 = vsel %vm1752, %v444, %v773
        %v1760 = vsel %vm1752, %v445, %v775
        %v1761 = vsel %vm1752, %v446, %v777
        %v1762 = vsel %vm1752, %v447, %v779
        %v1763 = vsel %vm1752, %v448, %v781
        %v1764 = vsel %vm1752, %v449, %v783
        %v1765 = vsel %vm1752, %v450, %v785
        %v1766 = vsel %vm1752, %v451, %v787
        %v1767 = vsel %vm1752, %v452, %v789
        %v1768 = vsel %vm1752, %v453, %v791
        %v1769 = vsel %vm1752, %v454, %v793
        %v1770 = vsel %vm1752, %v455, %v795
        %v1771 = vsel %vm1752, %v456, %v797
        %v1772 = vsel %vm1752, %v457, %v799
        %v1773 = vsel %vm1752, %v458, %v801
        %v1774 = vsel %vm1752, %v459, %v803
        %v1775 = vsel %vm1752, %v460, %v805
        %v1776 = vsel %vm1752, %v461, %v807
        %v1777 = vsel %vm1752, %v462, %v809
        %v1778 = vsel %vm1752, %v463, %v811
        %v1779 = vsel %vm1752, %v464, %v813
        %v1780 = vsel %vm1752, %v465, %v815
        %v1781 = vsel %vm1752, %v466, %v817
        %v1782 = vsel %vm1752, %v467, %v819
        %v1783 = vsel %vm1752, %v468, %v821
        %v1784 = vsel %vm1752, %v469, %v823
        %vm1785 = vcmask 64512
        %v1786 = vsel %vm1785, %v1753, %v889
        %v1787 = vsel %vm1785, %v1754, %v891
        %v1788 = vsel %vm1785, %v1755, %v893
        %v1789 = vsel %vm1785, %v1756, %v895
        %v1790 = vsel %vm1785, %v1757, %v897
        %v1791 = vsel %vm1785, %v1758, %v899
        %v1792 = vsel %vm1785, %v1759, %v901
        %v1793 = vsel %vm1785, %v1760, %v903
        %v1794 = vsel %vm1785, %v1761, %v905
        %v1795 = vsel %vm1785, %v1762, %v907
        %v1796 = vsel %vm1785, %v1763, %v909
        %v1797 = vsel %vm1785, %v1764, %v911
        %v1798 = vsel %vm1785, %v1765, %v913
        %v1799 = vsel %vm1785, %v1766, %v915
        %v1800 = vsel %vm1785, %v1767, %v917
        %v1801 = vsel %vm1785, %v1768, %v919
        %v1802 = vsel %vm1785, %v1769, %v921
        %v1803 = vsel %vm1785, %v1770, %v923
        %v1804 = vsel %vm1785, %v1771, %v925
        %v1805 = vsel %vm1785, %v1772, %v927
        %v1806 = vsel %vm1785, %v1773, %v929
        %v1807 = vsel %vm1785, %v1774, %v931
        %v1808 = vsel %vm1785, %v1775, %v933
        %v1809 = vsel %vm1785, %v1776, %v935
        %v1810 = vsel %vm1785, %v1777, %v937
        %v1811 = vsel %vm1785, %v1778, %v939
        %v1812 = vsel %vm1785, %v1779, %v941
        %v1813 = vsel %vm1785, %v1780, %v943
        %v1814 = vsel %vm1785, %v1781, %v945
        %v1815 = vsel %vm1785, %v1782, %v947
        %v1816 = vsel %vm1785, %v1783, %v949
        %v1817 = vsel %vm1785, %v1784, %v951
        %vm1818 = vcmask 97280
        %v1819 = vsel %vm1818, %v1786, %v1017
        %v1820 = vsel %vm1818, %v1787, %v1019
        %v1821 = vsel %vm1818, %v1788, %v1021
        %v1822 = vsel %vm1818, %v1789, %v1023
        %v1823 = vsel %vm1818, %v1790, %v1025
        %v1824 = vsel %vm1818, %v1791, %v1027
        %v1825 = vsel %vm1818, %v1792, %v1029
        %v1826 = vsel %vm1818, %v1793, %v1031
        %v1827 = vsel %vm1818, %v1794, %v1033
        %v1828 = vsel %vm1818, %v1795, %v1035
        %v1829 = vsel %vm1818, %v1796, %v1037
        %v1830 = vsel %vm1818, %v1797, %v1039
        %v1831 = vsel %vm1818, %v1798, %v1041
        %v1832 = vsel %vm1818, %v1799, %v1043
        %v1833 = vsel %vm1818, %v1800, %v1045
        %v1834 = vsel %vm1818, %v1801, %v1047
        %v1835 = vsel %vm1818, %v1802, %v1049
        %v1836 = vsel %vm1818, %v1803, %v1051
        %v1837 = vsel %vm1818, %v1804, %v1053
        %v1838 = vsel %vm1818, %v1805, %v1055
        %v1839 = vsel %vm1818, %v1806, %v1057
        %v1840 = vsel %vm1818, %v1807, %v1059
        %v1841 = vsel %vm1818, %v1808, %v1061
        %v1842 = vsel %vm1818, %v1809, %v1063
        %v1843 = vsel %vm1818, %v1810, %v1065
        %v1844 = vsel %vm1818, %v1811, %v1067
        %v1845 = vsel %vm1818, %v1812, %v1069
        %v1846 = vsel %vm1818, %v1813, %v1071
        %v1847 = vsel %vm1818, %v1814, %v1073
        %v1848 = vsel %vm1818, %v1815, %v1075
        %v1849 = vsel %vm1818, %v1816, %v1077
        %v1850 = vsel %vm1818, %v1817, %v1079
        %vm1851 = vcmask 130048
        %v1852 = vsel %vm1851, %v1819, %v1145
        %v1853 = vsel %vm1851, %v1820, %v1147
        %v1854 = vsel %vm1851, %v1821, %v1149
        %v1855 = vsel %vm1851, %v1822, %v1151
        %v1856 = vsel %vm1851, %v1823, %v1153
        %v1857 = vsel %vm1851, %v1824, %v1155
        %v1858 = vsel %vm1851, %v1825, %v1157
        %v1859 = vsel %vm1851, %v1826, %v1159
        %v1860 = vsel %vm1851, %v1827, %v1161
        %v1861 = vsel %vm1851, %v1828, %v1163
        %v1862 = vsel %vm1851, %v1829, %v1165
        %v1863 = vsel %vm1851, %v1830, %v1167
        %v1864 = vsel %vm1851, %v1831, %v1169
        %v1865 = vsel %vm1851, %v1832, %v1171
        %v1866 = vsel %vm1851, %v1833, %v1173
        %v1867 = vsel %vm1851, %v1834, %v1175
        %v1868 = vsel %vm1851, %v1835, %v1177
        %v1869 = vsel %vm1851, %v1836, %v1179
        %v1870 = vsel %vm1851, %v1837, %v1181
        %v1871 = vsel %vm1851, %v1838, %v1183
        %v1872 = vsel %vm1851, %v1839, %v1185
        %v1873 = vsel %vm1851, %v1840, %v1187
        %v1874 = vsel %vm1851, %v1841, %v1189
        %v1875 = vsel %vm1851, %v1842, %v1191
        %v1876 = vsel %vm1851, %v1843, %v1193
        %v1877 = vsel %vm1851, %v1844, %v1195
        %v1878 = vsel %vm1851, %v1845, %v1197
        %v1879 = vsel %vm1851, %v1846, %v1199
        %v1880 = vsel %vm1851, %v1847, %v1201
        %v1881 = vsel %vm1851, %v1848, %v1203
        %v1882 = vsel %vm1851, %v1849, %v1205
        %v1883 = vsel %vm1851, %v1850, %v1207
        %vm1884 = vcmask 162816
        %v1885 = vsel %vm1884, %v1852, %v1273
        %v1886 = vsel %vm1884, %v1853, %v1275
        %v1887 = vsel %vm1884, %v1854, %v1277
        %v1888 = vsel %vm1884, %v1855, %v1279
        %v1889 = vsel %vm1884, %v1856, %v1281
        %v1890 = vsel %vm1884, %v1857, %v1283
        %v1891 = vsel %vm1884, %v1858, %v1285
        %v1892 = vsel %vm1884, %v1859, %v1287
        %v1893 = vsel %vm1884, %v1860, %v1289
        %v1894 = vsel %vm1884, %v1861, %v1291
        %v1895 = vsel %vm1884, %v1862, %v1293
        %v1896 = vsel %vm1884, %v1863, %v1295
        %v1897 = vsel %vm1884, %v1864, %v1297
        %v1898 = vsel %vm1884, %v1865, %v1299
        %v1899 = vsel %vm1884, %v1866, %v1301
        %v1900 = vsel %vm1884, %v1867, %v1303
        %v1901 = vsel %vm1884, %v1868, %v1305
        %v1902 = vsel %vm1884, %v1869, %v1307
        %v1903 = vsel %vm1884, %v1870, %v1309
        %v1904 = vsel %vm1884, %v1871, %v1311
        %v1905 = vsel %vm1884, %v1872, %v1313
        %v1906 = vsel %vm1884, %v1873, %v1315
        %v1907 = vsel %vm1884, %v1874, %v1317
        %v1908 = vsel %vm1884, %v1875, %v1319
        %v1909 = vsel %vm1884, %v1876, %v1321
        %v1910 = vsel %vm1884, %v1877, %v1323
        %v1911 = vsel %vm1884, %v1878, %v1325
        %v1912 = vsel %vm1884, %v1879, %v1327
        %v1913 = vsel %vm1884, %v1880, %v1329
        %v1914 = vsel %vm1884, %v1881, %v1331
        %v1915 = vsel %vm1884, %v1882, %v1333
        %v1916 = vsel %vm1884, %v1883, %v1335
        %vm1917 = vcmask 195584
        %v1918 = vsel %vm1917, %v1885, %v1401
        %v1919 = vsel %vm1917, %v1886, %v1403
        %v1920 = vsel %vm1917, %v1887, %v1405
        %v1921 = vsel %vm1917, %v1888, %v1407
        %v1922 = vsel %vm1917, %v1889, %v1409
        %v1923 = vsel %vm1917, %v1890, %v1411
        %v1924 = vsel %vm1917, %v1891, %v1413
        %v1925 = vsel %vm1917, %v1892, %v1415
        %v1926 = vsel %vm1917, %v1893, %v1417
        %v1927 = vsel %vm1917, %v1894, %v1419
        %v1928 = vsel %vm1917, %v1895, %v1421
        %v1929 = vsel %vm1917, %v1896, %v1423
        %v1930 = vsel %vm1917, %v1897, %v1425
        %v1931 = vsel %vm1917, %v1898, %v1427
        %v1932 = vsel %vm1917, %v1899, %v1429
        %v1933 = vsel %vm1917, %v1900, %v1431
        %v1934 = vsel %vm1917, %v1901, %v1433
        %v1935 = vsel %vm1917, %v1902, %v1435
        %v1936 = vsel %vm1917, %v1903, %v1437
        %v1937 = vsel %vm1917, %v1904, %v1439
        %v1938 = vsel %vm1917, %v1905, %v1441
        %v1939 = vsel %vm1917, %v1906, %v1443
        %v1940 = vsel %vm1917, %v1907, %v1445
        %v1941 = vsel %vm1917, %v1908, %v1447
        %v1942 = vsel %vm1917, %v1909, %v1449
        %v1943 = vsel %vm1917, %v1910, %v1451
        %v1944 = vsel %vm1917, %v1911, %v1453
        %v1945 = vsel %vm1917, %v1912, %v1455
        %v1946 = vsel %vm1917, %v1913, %v1457
        %v1947 = vsel %vm1917, %v1914, %v1459
        %v1948 = vsel %vm1917, %v1915, %v1461
        %v1949 = vsel %vm1917, %v1916, %v1463
        %vm1950 = vcmask 228352
        %v1951 = vsel %vm1950, %v1918, %v1529
        %v1952 = vsel %vm1950, %v1919, %v1531
        %v1953 = vsel %vm1950, %v1920, %v1533
        %v1954 = vsel %vm1950, %v1921, %v1535
        %v1955 = vsel %vm1950, %v1922, %v1537
        %v1956 = vsel %vm1950, %v1923, %v1539
        %v1957 = vsel %vm1950, %v1924, %v1541
        %v1958 = vsel %vm1950, %v1925, %v1543
        %v1959 = vsel %vm1950, %v1926, %v1545
        %v1960 = vsel %vm1950, %v1927, %v1547
        %v1961 = vsel %vm1950, %v1928, %v1549
        %v1962 = vsel %vm1950, %v1929, %v1551
        %v1963 = vsel %vm1950, %v1930, %v1553
        %v1964 = vsel %vm1950, %v1931, %v1555
        %v1965 = vsel %vm1950, %v1932, %v1557
        %v1966 = vsel %vm1950, %v1933, %v1559
        %v1967 = vsel %vm1950, %v1934, %v1561
        %v1968 = vsel %vm1950, %v1935, %v1563
        %v1969 = vsel %vm1950, %v1936, %v1565
        %v1970 = vsel %vm1950, %v1937, %v1567
        %v1971 = vsel %vm1950, %v1938, %v1569
        %v1972 = vsel %vm1950, %v1939, %v1571
        %v1973 = vsel %vm1950, %v1940, %v1573
        %v1974 = vsel %vm1950, %v1941, %v1575
        %v1975 = vsel %vm1950, %v1942, %v1577
        %v1976 = vsel %vm1950, %v1943, %v1579
        %v1977 = vsel %vm1950, %v1944, %v1581
        %v1978 = vsel %vm1950, %v1945, %v1583
        %v1979 = vsel %vm1950, %v1946, %v1585
        %v1980 = vsel %vm1950, %v1947, %v1587
        %v1981 = vsel %vm1950, %v1948, %v1589
        %v1982 = vsel %vm1950, %v1949, %v1591
        %vm1983 = vcmask 261120
        %v1984 = vsel %vm1983, %v1951, %v1657
        %v1985 = vsel %vm1983, %v1952, %v1659
        %v1986 = vsel %vm1983, %v1953, %v1661
        %v1987 = vsel %vm1983, %v1954, %v1663
        %v1988 = vsel %vm1983, %v1955, %v1665
        %v1989 = vsel %vm1983, %v1956, %v1667
        %v1990 = vsel %vm1983, %v1957, %v1669
        %v1991 = vsel %vm1983, %v1958, %v1671
        %v1992 = vsel %vm1983, %v1959, %v1673
        %v1993 = vsel %vm1983, %v1960, %v1675
        %v1994 = vsel %vm1983, %v1961, %v1677
        %v1995 = vsel %vm1983, %v1962, %v1679
        %v1996 = vsel %vm1983, %v1963, %v1681
        %v1997 = vsel %vm1983, %v1964, %v1683
        %v1998 = vsel %vm1983, %v1965, %v1685
        %v1999 = vsel %vm1983, %v1966, %v1687
        %v2000 = vsel %vm1983, %v1967, %v1689
        %v2001 = vsel %vm1983, %v1968, %v1691
        %v2002 = vsel %vm1983, %v1969, %v1693
        %v2003 = vsel %vm1983, %v1970, %v1695
        %v2004 = vsel %vm1983, %v1971, %v1697
        %v2005 = vsel %vm1983, %v1972, %v1699
        %v2006 = vsel %vm1983, %v1973, %v1701
        %v2007 = vsel %vm1983, %v1974, %v1703
        %v2008 = vsel %vm1983, %v1975, %v1705
        %v2009 = vsel %vm1983, %v1976, %v1707
        %v2010 = vsel %vm1983, %v1977, %v1709
        %v2011 = vsel %vm1983, %v1978, %v1711
        %v2012 = vsel %vm1983, %v1979, %v1713
        %v2013 = vsel %vm1983, %v1980, %v1715
        %v2014 = vsel %vm1983, %v1981, %v1717
        %v2015 = vsel %vm1983, %v1982, %v1719
        %v2016 = vld [vmem:[%s4] sm:$0xff]
        %2018 = vset.pattern.permute.xlu0 0
        %2019 = vperm.xlu0 %2018, %v2016
        %v2020 = vpop.permute.xlu0 %2019
        %v2023 = vsel %vm308, %v437, 0
        %v2026 = vsel %vm308, %v1984, 0
        %v2029 = vsel %vm308, %v1985, 0
        %v2032 = vsel %vm308, %v1986, 0
        %v2035 = vsel %vm308, %v1987, 0
        %v2038 = vsel %vm308, %v1988, 0
        %v2041 = vsel %vm308, %v1989, 0
        %v2044 = vsel %vm308, %v1990, 0
        %v2047 = vsel %vm308, %v1991, 0
        %v2050 = vsel %vm308, %v1992, 0
        %v2053 = vsel %vm308, %v1993, 0
        %v2056 = vsel %vm308, %v1994, 0
        %v2059 = vsel %vm308, %v1995, 0
        %v2062 = vsel %vm308, %v1996, 0
        %v2065 = vsel %vm308, %v1997, 0
        %v2068 = vsel %vm308, %v1998, 0
        %v2071 = vsel %vm308, %v1999, 0
        %v2074 = vsel %vm308, %v2000, 0
        %v2077 = vsel %vm308, %v2001, 0
        %v2080 = vsel %vm308, %v2002, 0
        %v2083 = vsel %vm308, %v2003, 0
        %v2086 = vsel %vm308, %v2004, 0
        %v2089 = vsel %vm308, %v2005, 0
        %v2092 = vsel %vm308, %v2006, 0
        %v2095 = vsel %vm308, %v2007, 0
        %v2098 = vsel %vm308, %v2008, 0
        %v2101 = vsel %vm308, %v2009, 0
        %v2104 = vsel %vm308, %v2010, 0
        %v2107 = vsel %vm308, %v2011, 0
        %v2110 = vsel %vm308, %v2012, 0
        %v2113 = vsel %vm308, %v2013, 0
        %v2116 = vsel %vm308, %v2014, 0
        %v2119 = vsel %vm308, %v2015, 0
        %2121 = vmatpush.xpose.msra.mxu0 %v2071
        %2122 = vmatpush.xpose.msra.mxu0 %v2068
        %2123 = vmatpush.xpose.msra.mxu0 %v2065
        %2124 = vmatpush.xpose.msra.mxu0 %v2062
        %2125 = vmatpush.xpose.msra.mxu0 %v2059
        %2126 = vmatpush.xpose.msra.mxu0 %v2056
        %2127 = vmatpush.xpose.msra.mxu0 %v2053
        %2128 = vmatpush.xpose.msra.mxu0 %v2050
        %2129 = vmatpush.xpose.msra.mxu0 %v2047
        %2130 = vmatpush.xpose.msra.mxu0 %v2044
        %2131 = vmatpush.xpose.msra.mxu0 %v2041
        %2132 = vmatpush.xpose.msra.mxu0 %v2038
        %2133 = vmatpush.xpose.msra.mxu0 %v2035
        %2134 = vmatpush.xpose.msra.mxu0 %v2032
        %2135 = vmatpush.xpose.msra.mxu0 %v2029
        %2136 = vmatpush.xpose.msra.mxu0 %v2026
        %2137 = vmatmul.f32.gmra.mxu0 %v2023
        %v2138 = vpop.f32.mrf.mxu0
        %v2139 = vadd.f32 %v2020, %v2138
        %2140 = vdwg.mxu0
        %2141 = vmatpush.xpose.msra.mxu0 %v2119
        %2142 = vmatpush.xpose.msra.mxu0 %v2116
        %2143 = vmatpush.xpose.msra.mxu0 %v2113
        %2144 = vmatpush.xpose.msra.mxu0 %v2110
        %2145 = vmatpush.xpose.msra.mxu0 %v2107
        %2146 = vmatpush.xpose.msra.mxu0 %v2104
        %2147 = vmatpush.xpose.msra.mxu0 %v2101
        %2148 = vmatpush.xpose.msra.mxu0 %v2098
        %2149 = vmatpush.xpose.msra.mxu0 %v2095
        %2150 = vmatpush.xpose.msra.mxu0 %v2092
        %2151 = vmatpush.xpose.msra.mxu0 %v2089
        %2152 = vmatpush.xpose.msra.mxu0 %v2086
        %2153 = vmatpush.xpose.msra.mxu0 %v2083
        %2154 = vmatpush.xpose.msra.mxu0 %v2080
        %2155 = vmatpush.xpose.msra.mxu0 %v2077
        %2156 = vmatpush.xpose.msra.mxu0 %v2074
        %2157 = vmatmul.f32.gmra.mxu0 %v2023
        %v2158 = vpop.f32.mrf.mxu0
        %v2159 = vadd.f32 %v2020, %v2158
        %2160 = vdwg.mxu0
        %2161 = vst [vmem:[%s290] sm:$0xff] %v2139
        %2162 = vst [vmem:[%s290 + $0x8] sm:$0xff] %v2159
        %s2163 = sand.u32 %s163, 1
        %s2164 = scalar_lea.sflag [#allocation3], %s2163
        %s2165 = sand.u32 %s163, 1
        %s2166 = smul.addr %s2165, 16
        %s2167 = scalar_lea.vmem [#allocation2], %s2166
        // Predicated region
        $region45: #{tpu_custom_call.1} parent=43 // pred_check
          %p2168 = pneg %p173
        $region46: #{tpu_custom_call.1} parent=43 // pred_check_branch
          %2170 = sbr.rel (%p2168) target = $region48
        $region47: #{tpu_custom_call.1} parent=43 // pred_region
          %2172 = vsyncadd %s2164, 0
          %s2173 = smul.addr %s24, 2
          %s2174 = smul.addr %s2173, 8
          %s2175 = scalar_lea.hbm %s6, %s2174
          %s2177 = sshll.u32 %s2167, 4
          %s2178 = int_to_ptr.vmem [resolvable:$true] %s2177
          %s2179 = sshll.u32 %s2175, 4
          %s2180 = int_to_ptr.hbm [resolvable:$true] %s2179
          %2182 = dma.vmem_to_hbm [thread:$0]  %s2178, 256, %s2180, %s2164
        $region48: #{tpu_custom_call.1} parent=43 // pred_fallthru
          _
        // Predicated region
        $region49: #{tpu_custom_call.1} parent=43 // pred_check
          %p2183 = pneg %p194
        $region50: #{tpu_custom_call.1} parent=43 // pred_check_branch
          %2185 = sbr.rel (%p2183) target = $region52
        $region51: #{tpu_custom_call.1} parent=43 // pred_region
          _
        $region52: #{tpu_custom_call.1} parent=43 // pred_fallthru
          _
        // Predicated region
        $region53: #{tpu_custom_call.1} parent=43 // pred_check
          %p2186 = pneg %p215
        $region54: #{tpu_custom_call.1} parent=43 // pred_check_branch
          %2188 = sbr.rel (%p2186) target = $region56
        $region55: #{tpu_custom_call.1} parent=43 // pred_region
          %2190 = vsyncadd [#allocation5], 0
          %s2192 = sshll.u32 [#allocation4], 4
          %s2193 = int_to_ptr.vmem [resolvable:$true] %s2192
          %s2194 = sshll.u32 %s8, 4
          %s2195 = int_to_ptr.hbm [resolvable:$true] %s2194
          %2197 = dma.vmem_to_hbm [thread:$0]  %s2193, 16, %s2195, [#allocation5]
        $region56: #{tpu_custom_call.1} parent=43 // pred_fallthru
          _
        // Predicated region
        $region57: #{tpu_custom_call.1} parent=43 // pred_check
          %p2198 = pneg %p194
        $region58: #{tpu_custom_call.1} parent=43 // pred_check_branch
          %2200 = sbr.rel (%p2198) target = $region60
        $region59: #{tpu_custom_call.1} parent=43 // pred_region
          _
        $region60: #{tpu_custom_call.1} parent=43 // pred_fallthru
          _
        // Predicated region
        $region61: #{tpu_custom_call.1} parent=43 // pred_check
          %p2201 = pneg %p215
        $region62: #{tpu_custom_call.1} parent=43 // pred_check_branch
          %2203 = sbr.rel (%p2201) target = $region64
        $region63: #{tpu_custom_call.1} parent=43 // pred_region
          %2205 = dma.done [#allocation5], 16
        $region64: #{tpu_custom_call.1} parent=43 // pred_fallthru
          _
      $region44: #{tpu_custom_call.1} parent=5 // pred_fallthru
        _
      %p2206 = scmp.le.s32.totalorder 2, %s19
      // Predicated region
      $region65: #{tpu_custom_call.1} parent=5 // pred_check
        %p2207 = pneg %p2206
      $region66: #{tpu_custom_call.1} parent=5 // pred_check_branch
        %2209 = sbr.rel (%p2207) target = $region68
      $region67: #{tpu_custom_call.1} parent=5 // pred_region
        %s2210 = ssub.s32 %s19, 2
        // Predicated region
        $region69: #{tpu_custom_call.1} parent=67 // pred_check
          %p2211 = pneg %p179
        $region70: #{tpu_custom_call.1} parent=67 // pred_check_branch
          %2213 = sbr.rel (%p2211) target = $region72
        $region71: #{tpu_custom_call.1} parent=67 // pred_region
          %s2214 = sand.u32 %s164, 1
          %s2215 = scalar_lea.sflag [#allocation3], %s2214
          %s2216 = sand.u32 %s164, 1
          %s2217 = smul.addr %s2216, 16
          %s2218 = scalar_lea.vmem [#allocation2], %s2217
          %2220 = dma.done %s2215, 256
        $region72: #{tpu_custom_call.1} parent=67 // pred_fallthru
          _
      $region68: #{tpu_custom_call.1} parent=5 // pred_fallthru
        _
    $region6: #{tpu_custom_call.1} parent=1 // loop_footer
      %s23 = sadd.s32 1, %s19
    $region7: #{tpu_custom_call.1} parent=1 // loop_footer_branch
      %18 = sbr.rel target = $region3
    $region8: #{tpu_custom_call.1} parent=1 // loop_exit
      _
    %2221 = vsyncpa [#allocation3], 1
    %s2222 = scalar_lea.sflag [#allocation3], 1
    %2223 = vsyncpa %s2222, 1
    %2224 = vsyncpa [#allocation5], 1

</llo_original>
